<compile_context>
chip_gen: v6e
topology: v6e:2x2x1
jax: 0.10.0
libtpu: 0.0.40
codegen_flags: <defaults>
</compile_context>

<pallas_src>
import functools

import jax
import jax.numpy as jnp
from jax.experimental import pallas as pl
from jax.experimental.pallas import tpu as pltpu

C_IN, C_MID, C_OUT, K = 10, 16, 10, 3


def _fused_kernel(xpad_ref, w1_ref, b1_ref, w2_ref, b2_ref, out_ref, *, H, W, nb):
    # xpad_ref: (nb, Cin, L)  with L = H*W + 2*(W+1); pixel (h, w) lives at flat index
    #           (W+1) + h*W + w, so tap (dy, dx) is the static lane slice
    #           [dy*W+dx : dy*W+dx + H*W].
    # w1_ref:   (9, Cmid, Cin)   b1_ref: (Cmid, 1)
    # w2_ref:   (Cout, Cmid)     b2_ref: (Cout, 1)
    # out_ref:  (nb, Cout, H*W)  -- lane-dense (H*W multiple of 128)
    HW = H * W
    # lane-position masks fixing horizontal wrap-around of the flattened layout
    col = jax.lax.broadcasted_iota(jnp.int32, (1, HW), 1) % W
    mask_l = (col != 0).astype(jnp.float32)        # dx == 0: w == 0 column is zero-pad
    mask_r = (col != W - 1).astype(jnp.float32)    # dx == 2: w == W-1 column is zero-pad

    b1 = b1_ref[...]
    w2 = w2_ref[...]
    b2 = b2_ref[...]

    for i in range(nb):                             # static unroll over samples in block
        xi = xpad_ref[i]                            # (Cin, L): one VMEM load per sample
        acc = jnp.zeros((C_MID, HW), jnp.float32)
        for dy in range(K):
            for dx in range(K):
                s = dy * W + dx
                tap = xi[:, s:s + HW]               # (Cin, HW), static slice (in-reg)
                if dx == 0:
                    tap = tap * mask_l
                elif dx == 2:
                    tap = tap * mask_r
                acc = acc + jnp.dot(w1_ref[dy * K + dx], tap,
                                    preferred_element_type=jnp.float32)
        h = jnp.maximum(acc + b1, 0.0)              # conv1 bias + ReLU
        # TODO(synk): Dropout2d(p=0.1) is identity in eval mode; training-mode
        # per-channel dropout (mask + 1/(1-p) scale) intentionally omitted.
        y = jnp.dot(w2, h, preferred_element_type=jnp.float32) + b2   # 1x1 conv + bias
        res = xi[:, W + 1:W + 1 + HW]               # centre tap == original x (Cin == Cout)
        out_ref[i] = (res + y).astype(out_ref.dtype)


def _pick_samples_per_block(n):
    # keep >= 2 grid steps when possible (pipelining / v7x megacore); cap block at 8 samples
    for nb in (8, 4, 2):
        if n % nb == 0 and n // nb >= 2:
            return nb
    return 1


def task330_forward(x_nchw, params):
    """Fused forward pass. x_nchw: (N, 10, H, W) float32. Returns (N, 10, H, W)."""
    w1, b1, w2, b2 = params  # w1: (16,10,3,3), b1: (16,), w2: (10,16,1,1), b2: (10,)
    N, C, H, W = x_nchw.shape
    assert C == C_IN
    HW = H * W
    L = HW + 2 * (W + 1)

    # ---- JAX glue (pure layout plumbing, ~1.13x input bytes instead of 9x im2col) ----
    x_flat = x_nchw.reshape(N, C_IN, HW)                       # row-major (h*W + w)
    zpad = jnp.zeros((N, C_IN, W + 1), x_nchw.dtype)
    xpad = jnp.concatenate([zpad, x_flat, zpad], axis=-1)      # (N, Cin, L)

    # weights rearranged for the [C, HW] compute layout
    w1_taps = jnp.transpose(w1, (2, 3, 0, 1)).reshape(K * K, C_MID, C_IN)  # [tap, Cmid, Cin]
    b1_col = b1.reshape(C_MID, 1)
    w2_mat = w2[:, :, 0, 0]                                    # (Cout, Cmid)
    b2_col = b2.reshape(C_OUT, 1)

    nb = _pick_samples_per_block(N)
    kernel = functools.partial(_fused_kernel, H=H, W=W, nb=nb)

    # ---- Pallas kernel: all FLOPs (9 tap matmuls, bias, relu, 1x1 matmul, residual) ----
    out = pl.pallas_call(
        kernel,
        out_shape=jax.ShapeDtypeStruct((N, C_OUT, HW), x_nchw.dtype),
        grid_spec=pltpu.PrefetchScalarGridSpec(
            num_scalar_prefetch=0,
            grid=(N // nb,),
            in_specs=[
                pl.BlockSpec((nb, C_IN, L), lambda n: (n, 0, 0)),
                pl.BlockSpec((K * K, C_MID, C_IN), lambda n: (0, 0, 0)),
                pl.BlockSpec((C_MID, 1), lambda n: (0, 0)),
                pl.BlockSpec((C_OUT, C_MID), lambda n: (0, 0)),
                pl.BlockSpec((C_OUT, 1), lambda n: (0, 0)),
            ],
            out_specs=pl.BlockSpec((nb, C_OUT, HW), lambda n: (n, 0, 0)),
        ),
        compiler_params=pltpu.CompilerParams(
            dimension_semantics=("parallel",)),
    )(xpad, w1_taps, b1_col, w2_mat, b2_col)

    return out.reshape(N, C_OUT, H, W)


def reference_forward(x, params):
    """Plain-JAX reference (NCHW, eval-mode dropout)."""
    w1, b1, w2, b2 = params
    h = jax.lax.conv_general_dilated(
        x, w1, (1, 1), ((1, 1), (1, 1)),
        dimension_numbers=("NCHW", "OIHW", "NCHW"))
    h = jnp.maximum(h + b1[None, :, None, None], 0.0)
    y = jax.lax.conv_general_dilated(
        h, w2, (1, 1), ((0, 0), (0, 0)),
        dimension_numbers=("NCHW", "OIHW", "NCHW"))
    y = y + b2[None, :, None, None]
    return x + y


def init_params(key):
    """Deterministic parameter init mirroring the module's shapes."""
    k1, k2, k3, k4 = jax.random.split(key, 4)
    bound1 = 1.0 / jnp.sqrt(C_IN * K * K)
    bound2 = 1.0 / jnp.sqrt(C_MID * 1 * 1)
    w1 = jax.random.uniform(k1, (C_MID, C_IN, K, K), jnp.float32, -bound1, bound1)
    b1 = jax.random.uniform(k2, (C_MID,), jnp.float32, -bound1, bound1)
    w2 = jax.random.uniform(k3, (C_OUT, C_MID, 1, 1), jnp.float32, -bound2, bound2)
    b2 = jax.random.uniform(k4, (C_OUT,), jnp.float32, -bound2, bound2)
    return (w1, b1, w2, b2)


if __name__ == "__main__":
    key = jax.random.PRNGKey(0)
    kp, kx = jax.random.split(key)
    params = init_params(kp)
    x = jax.random.normal(kx, (2, C_IN, 16, 16), jnp.float32)

    out = task330_forward(x, params)
    out = jax.block_until_ready(out)

    ref = jax.block_until_ready(reference_forward(x, params))
    assert out.shape == x.shape and out.dtype == x.dtype
    assert jnp.allclose(out, ref, atol=1e-4, rtol=1e-4), "mismatch vs reference"

    print("KERNEL_OK")
</pallas_src>

<mosaic_0001>
module attributes {stable_mosaic.version = 11 : i64} {
  func.func @_fused_kernel(%arg0: i32, %arg1: memref<1x10x290xf32, #tpu.memory_space<vmem>>, %arg2: memref<9x16x10xf32, #tpu.memory_space<vmem>>, %arg3: memref<16x1xf32, #tpu.memory_space<vmem>>, %arg4: memref<10x16xf32, #tpu.memory_space<vmem>>, %arg5: memref<10x1xf32, #tpu.memory_space<vmem>>, %arg6: memref<1x10x256xf32, #tpu.memory_space<vmem>>) attributes {dimension_semantics = [#tpu.dimension_semantics<parallel>], iteration_bounds = array<i64: 2>, scalar_prefetch = 0 : i64, scratch_operands = 0 : i64, tpu.core_type = #tpu.core_type<tc>, window_params = [{transform_indices = @transform_0, window_bounds = array<i64: 1, 10, 290>}, {pipeline_mode = #tpu.pipeline_mode<synchronous>, transform_indices = @transform_1, window_bounds = array<i64: 9, 16, 10>}, {pipeline_mode = #tpu.pipeline_mode<synchronous>, transform_indices = @transform_2, window_bounds = array<i64: 16, 1>}, {pipeline_mode = #tpu.pipeline_mode<synchronous>, transform_indices = @transform_3, window_bounds = array<i64: 10, 16>}, {pipeline_mode = #tpu.pipeline_mode<synchronous>, transform_indices = @transform_4, window_bounds = array<i64: 10, 1>}, {transform_indices = @transform_5, window_bounds = array<i64: 1, 10, 256>}]} {
    %0 = tpu.iota {dimensions = array<i32: 1>} : vector<1x256xi32>
    %c16_i32 = arith.constant 16 : i32
    %c0_i32 = arith.constant 0 : i32
    %1 = arith.cmpi eq, %c16_i32, %c0_i32 : i32
    %c1_i32 = arith.constant 1 : i32
    %2 = arith.select %1, %c1_i32, %c16_i32 : i32
    %3 = vector.broadcast %2 : i32 to vector<1x256xi32>
    %4 = arith.remsi %0, %3 : vector<1x256xi32>
    %c0_i32_0 = arith.constant 0 : i32
    %5 = vector.broadcast %c0_i32_0 : i32 to vector<1x256xi32>
    %6 = arith.cmpi ne, %4, %5 : vector<1x256xi32>
    %c0_i32_1 = arith.constant 0 : i32
    %7 = vector.broadcast %c0_i32_1 : i32 to vector<1x256xi32>
    %8 = arith.cmpi slt, %4, %7 : vector<1x256xi32>
    %c0_i32_2 = arith.constant 0 : i32
    %9 = arith.cmpi slt, %2, %c0_i32_2 : i32
    %10 = vector.broadcast %9 : i1 to vector<1x256xi1>
    %11 = vector.broadcast %10 : vector<1x256xi1> to vector<1x256xi1>
    %12 = arith.xori %8, %11 : vector<1x256xi1>
    %13 = arith.andi %12, %6 : vector<1x256xi1>
    %14 = vector.broadcast %2 : i32 to vector<1x256xi32>
    %15 = arith.addi %4, %14 : vector<1x256xi32>
    %16 = arith.select %13, %15, %4 : vector<1x256xi1>, vector<1x256xi32>
    %c0_i32_3 = arith.constant 0 : i32
    %17 = vector.broadcast %c0_i32_3 : i32 to vector<1x256xi32>
    %18 = arith.cmpi ne, %16, %17 : vector<1x256xi32>
    %19 = arith.extui %18 : vector<1x256xi1> to vector<1x256xi32>
    %20 = arith.sitofp %19 : vector<1x256xi32> to vector<1x256xf32>
    %c15_i32 = arith.constant 15 : i32
    %21 = vector.broadcast %c15_i32 : i32 to vector<1x256xi32>
    %22 = arith.cmpi ne, %16, %21 : vector<1x256xi32>
    %23 = arith.extui %22 : vector<1x256xi1> to vector<1x256xi32>
    %24 = arith.sitofp %23 : vector<1x256xi32> to vector<1x256xf32>
    %c0 = arith.constant 0 : index
    %c0_4 = arith.constant 0 : index
    %25 = vector.load %arg3[%c0, %c0_4] : memref<16x1xf32, #tpu.memory_space<vmem>>, vector<16x1xf32>
    %c0_5 = arith.constant 0 : index
    %c0_6 = arith.constant 0 : index
    %26 = vector.load %arg4[%c0_5, %c0_6] : memref<10x16xf32, #tpu.memory_space<vmem>>, vector<10x16xf32>
    %c0_7 = arith.constant 0 : index
    %c0_8 = arith.constant 0 : index
    %27 = vector.load %arg5[%c0_7, %c0_8] : memref<10x1xf32, #tpu.memory_space<vmem>>, vector<10x1xf32>
    %c0_9 = arith.constant 0 : index
    %c0_10 = arith.constant 0 : index
    %c0_11 = arith.constant 0 : index
    %28 = vector.load %arg1[%c0_9, %c0_10, %c0_11] : memref<1x10x290xf32, #tpu.memory_space<vmem>>, vector<1x10x290xf32>
    %29 = vector.shape_cast %28 : vector<1x10x290xf32> to vector<10x290xf32>
    %cst = arith.constant 0.000000e+00 : f32
    %30 = vector.broadcast %cst : f32 to vector<16x256xf32>
    %31 = vector.extract_strided_slice %29 {offsets = [0, 0], sizes = [10, 256], strides = [1, 1]} : vector<10x290xf32> to vector<10x256xf32>
    %32 = vector.broadcast %20 : vector<1x256xf32> to vector<10x256xf32>
    %33 = arith.mulf %31, %32 : vector<10x256xf32>
    %c0_12 = arith.constant 0 : index
    %c0_13 = arith.constant 0 : index
    %c0_14 = arith.constant 0 : index
    %34 = vector.load %arg2[%c0_12, %c0_13, %c0_14] : memref<9x16x10xf32, #tpu.memory_space<vmem>>, vector<1x16x10xf32>
    %35 = vector.shape_cast %34 : vector<1x16x10xf32> to vector<16x10xf32>
    %cst_15 = arith.constant dense<0.000000e+00> : vector<16x256xf32>
    %36 = tpu.matmul %35, %33, %cst_15 {dimension_numbers = #tpu.dot_dimension_numbers<[1], [0], [0], [1], [0, 0, 1, 1], [], []>} : vector<16x10xf32>, vector<10x256xf32>, vector<16x256xf32> -> vector<16x256xf32>
    %37 = arith.addf %30, %36 : vector<16x256xf32>
    %38 = vector.extract_strided_slice %29 {offsets = [0, 1], sizes = [10, 256], strides = [1, 1]} : vector<10x290xf32> to vector<10x256xf32>
    %c1 = arith.constant 1 : index
    %c0_16 = arith.constant 0 : index
    %c0_17 = arith.constant 0 : index
    %39 = vector.load %arg2[%c1, %c0_16, %c0_17] : memref<9x16x10xf32, #tpu.memory_space<vmem>>, vector<1x16x10xf32>
    %40 = vector.shape_cast %39 : vector<1x16x10xf32> to vector<16x10xf32>
    %cst_18 = arith.constant dense<0.000000e+00> : vector<16x256xf32>
    %41 = tpu.matmul %40, %38, %cst_18 {dimension_numbers = #tpu.dot_dimension_numbers<[1], [0], [0], [1], [0, 0, 1, 1], [], []>} : vector<16x10xf32>, vector<10x256xf32>, vector<16x256xf32> -> vector<16x256xf32>
    %42 = arith.addf %37, %41 : vector<16x256xf32>
    %43 = vector.extract_strided_slice %29 {offsets = [0, 2], sizes = [10, 256], strides = [1, 1]} : vector<10x290xf32> to vector<10x256xf32>
    %44 = vector.broadcast %24 : vector<1x256xf32> to vector<10x256xf32>
    %45 = arith.mulf %43, %44 : vector<10x256xf32>
    %c2 = arith.constant 2 : index
    %c0_19 = arith.constant 0 : index
    %c0_20 = arith.constant 0 : index
    %46 = vector.load %arg2[%c2, %c0_19, %c0_20] : memref<9x16x10xf32, #tpu.memory_space<vmem>>, vector<1x16x10xf32>
    %47 = vector.shape_cast %46 : vector<1x16x10xf32> to vector<16x10xf32>
    %cst_21 = arith.constant dense<0.000000e+00> : vector<16x256xf32>
    %48 = tpu.matmul %47, %45, %cst_21 {dimension_numbers = #tpu.dot_dimension_numbers<[1], [0], [0], [1], [0, 0, 1, 1], [], []>} : vector<16x10xf32>, vector<10x256xf32>, vector<16x256xf32> -> vector<16x256xf32>
    %49 = arith.addf %42, %48 : vector<16x256xf32>
    %50 = vector.extract_strided_slice %29 {offsets = [0, 16], sizes = [10, 256], strides = [1, 1]} : vector<10x290xf32> to vector<10x256xf32>
    %51 = vector.broadcast %20 : vector<1x256xf32> to vector<10x256xf32>
    %52 = arith.mulf %50, %51 : vector<10x256xf32>
    %c3 = arith.constant 3 : index
    %c0_22 = arith.constant 0 : index
    %c0_23 = arith.constant 0 : index
    %53 = vector.load %arg2[%c3, %c0_22, %c0_23] : memref<9x16x10xf32, #tpu.memory_space<vmem>>, vector<1x16x10xf32>
    %54 = vector.shape_cast %53 : vector<1x16x10xf32> to vector<16x10xf32>
    %cst_24 = arith.constant dense<0.000000e+00> : vector<16x256xf32>
    %55 = tpu.matmul %54, %52, %cst_24 {dimension_numbers = #tpu.dot_dimension_numbers<[1], [0], [0], [1], [0, 0, 1, 1], [], []>} : vector<16x10xf32>, vector<10x256xf32>, vector<16x256xf32> -> vector<16x256xf32>
    %56 = arith.addf %49, %55 : vector<16x256xf32>
    %57 = vector.extract_strided_slice %29 {offsets = [0, 17], sizes = [10, 256], strides = [1, 1]} : vector<10x290xf32> to vector<10x256xf32>
    %c4 = arith.constant 4 : index
    %c0_25 = arith.constant 0 : index
    %c0_26 = arith.constant 0 : index
    %58 = vector.load %arg2[%c4, %c0_25, %c0_26] : memref<9x16x10xf32, #tpu.memory_space<vmem>>, vector<1x16x10xf32>
    %59 = vector.shape_cast %58 : vector<1x16x10xf32> to vector<16x10xf32>
    %cst_27 = arith.constant dense<0.000000e+00> : vector<16x256xf32>
    %60 = tpu.matmul %59, %57, %cst_27 {dimension_numbers = #tpu.dot_dimension_numbers<[1], [0], [0], [1], [0, 0, 1, 1], [], []>} : vector<16x10xf32>, vector<10x256xf32>, vector<16x256xf32> -> vector<16x256xf32>
    %61 = arith.addf %56, %60 : vector<16x256xf32>
    %62 = vector.extract_strided_slice %29 {offsets = [0, 18], sizes = [10, 256], strides = [1, 1]} : vector<10x290xf32> to vector<10x256xf32>
    %63 = vector.broadcast %24 : vector<1x256xf32> to vector<10x256xf32>
    %64 = arith.mulf %62, %63 : vector<10x256xf32>
    %c5 = arith.constant 5 : index
    %c0_28 = arith.constant 0 : index
    %c0_29 = arith.constant 0 : index
    %65 = vector.load %arg2[%c5, %c0_28, %c0_29] : memref<9x16x10xf32, #tpu.memory_space<vmem>>, vector<1x16x10xf32>
    %66 = vector.shape_cast %65 : vector<1x16x10xf32> to vector<16x10xf32>
    %cst_30 = arith.constant dense<0.000000e+00> : vector<16x256xf32>
    %67 = tpu.matmul %66, %64, %cst_30 {dimension_numbers = #tpu.dot_dimension_numbers<[1], [0], [0], [1], [0, 0, 1, 1], [], []>} : vector<16x10xf32>, vector<10x256xf32>, vector<16x256xf32> -> vector<16x256xf32>
    %68 = arith.addf %61, %67 : vector<16x256xf32>
    %69 = vector.extract_strided_slice %29 {offsets = [0, 32], sizes = [10, 256], strides = [1, 1]} : vector<10x290xf32> to vector<10x256xf32>
    %70 = vector.broadcast %20 : vector<1x256xf32> to vector<10x256xf32>
    %71 = arith.mulf %69, %70 : vector<10x256xf32>
    %c6 = arith.constant 6 : index
    %c0_31 = arith.constant 0 : index
    %c0_32 = arith.constant 0 : index
    %72 = vector.load %arg2[%c6, %c0_31, %c0_32] : memref<9x16x10xf32, #tpu.memory_space<vmem>>, vector<1x16x10xf32>
    %73 = vector.shape_cast %72 : vector<1x16x10xf32> to vector<16x10xf32>
    %cst_33 = arith.constant dense<0.000000e+00> : vector<16x256xf32>
    %74 = tpu.matmul %73, %71, %cst_33 {dimension_numbers = #tpu.dot_dimension_numbers<[1], [0], [0], [1], [0, 0, 1, 1], [], []>} : vector<16x10xf32>, vector<10x256xf32>, vector<16x256xf32> -> vector<16x256xf32>
    %75 = arith.addf %68, %74 : vector<16x256xf32>
    %76 = vector.extract_strided_slice %29 {offsets = [0, 33], sizes = [10, 256], strides = [1, 1]} : vector<10x290xf32> to vector<10x256xf32>
    %c7 = arith.constant 7 : index
    %c0_34 = arith.constant 0 : index
    %c0_35 = arith.constant 0 : index
    %77 = vector.load %arg2[%c7, %c0_34, %c0_35] : memref<9x16x10xf32, #tpu.memory_space<vmem>>, vector<1x16x10xf32>
    %78 = vector.shape_cast %77 : vector<1x16x10xf32> to vector<16x10xf32>
    %cst_36 = arith.constant dense<0.000000e+00> : vector<16x256xf32>
    %79 = tpu.matmul %78, %76, %cst_36 {dimension_numbers = #tpu.dot_dimension_numbers<[1], [0], [0], [1], [0, 0, 1, 1], [], []>} : vector<16x10xf32>, vector<10x256xf32>, vector<16x256xf32> -> vector<16x256xf32>
    %80 = arith.addf %75, %79 : vector<16x256xf32>
    %81 = vector.extract_strided_slice %29 {offsets = [0, 34], sizes = [10, 256], strides = [1, 1]} : vector<10x290xf32> to vector<10x256xf32>
    %82 = vector.broadcast %24 : vector<1x256xf32> to vector<10x256xf32>
    %83 = arith.mulf %81, %82 : vector<10x256xf32>
    %c8 = arith.constant 8 : index
    %c0_37 = arith.constant 0 : index
    %c0_38 = arith.constant 0 : index
    %84 = vector.load %arg2[%c8, %c0_37, %c0_38] : memref<9x16x10xf32, #tpu.memory_space<vmem>>, vector<1x16x10xf32>
    %85 = vector.shape_cast %84 : vector<1x16x10xf32> to vector<16x10xf32>
    %cst_39 = arith.constant dense<0.000000e+00> : vector<16x256xf32>
    %86 = tpu.matmul %85, %83, %cst_39 {dimension_numbers = #tpu.dot_dimension_numbers<[1], [0], [0], [1], [0, 0, 1, 1], [], []>} : vector<16x10xf32>, vector<10x256xf32>, vector<16x256xf32> -> vector<16x256xf32>
    %87 = arith.addf %80, %86 : vector<16x256xf32>
    %88 = vector.broadcast %25 : vector<16x1xf32> to vector<16x256xf32>
    %89 = arith.addf %87, %88 : vector<16x256xf32>
    %cst_40 = arith.constant 0.000000e+00 : f32
    %90 = vector.broadcast %cst_40 : f32 to vector<16x256xf32>
    %91 = arith.maximumf %89, %90 : vector<16x256xf32>
    %cst_41 = arith.constant dense<0.000000e+00> : vector<10x256xf32>
    %92 = tpu.matmul %26, %91, %cst_41 {dimension_numbers = #tpu.dot_dimension_numbers<[1], [0], [0], [1], [0, 0, 1, 1], [], []>} : vector<10x16xf32>, vector<16x256xf32>, vector<10x256xf32> -> vector<10x256xf32>
    %93 = vector.broadcast %27 : vector<10x1xf32> to vector<10x256xf32>
    %94 = arith.addf %92, %93 : vector<10x256xf32>
    %95 = vector.extract_strided_slice %29 {offsets = [0, 17], sizes = [10, 256], strides = [1, 1]} : vector<10x290xf32> to vector<10x256xf32>
    %96 = arith.addf %95, %94 : vector<10x256xf32>
    %c0_42 = arith.constant 0 : index
    %c0_43 = arith.constant 0 : index
    %c0_44 = arith.constant 0 : index
    %97 = vector.load %arg6[%c0_42, %c0_43, %c0_44] : memref<1x10x256xf32, #tpu.memory_space<vmem>>, vector<1x10x256xf32>
    %98 = vector.shape_cast %97 : vector<1x10x256xf32> to vector<10x256xf32>
    %99 = vector.shape_cast %96 : vector<10x256xf32> to vector<1x10x256xf32>
    tpu.vector_store %arg6[%c0_42, %c0_43, %c0_44], %99 {strides = array<i32>} : memref<1x10x256xf32, #tpu.memory_space<vmem>>, vector<1x10x256xf32>,
    return
  }
  func.func @transform_0(%arg0: i32) -> (i32, i32, i32) {
    %c0_i32 = arith.constant 0 : i32
    %c0_i32_0 = arith.constant 0 : i32
    %c0_i32_1 = arith.constant 0 : i32
    return %arg0, %c0_i32, %c0_i32_0 : i32, i32, i32
  }
  func.func @transform_1(%arg0: i32) -> (i32, i32, i32) {
    %c0_i32 = arith.constant 0 : i32
    %c0_i32_0 = arith.constant 0 : i32
    %c0_i32_1 = arith.constant 0 : i32
    %c0_i32_2 = arith.constant 0 : i32
    return %c0_i32, %c0_i32_0, %c0_i32_1 : i32, i32, i32
  }
  func.func @transform_2(%arg0: i32) -> (i32, i32) {
    %c0_i32 = arith.constant 0 : i32
    %c0_i32_0 = arith.constant 0 : i32
    %c0_i32_1 = arith.constant 0 : i32
    return %c0_i32, %c0_i32_0 : i32, i32
  }
  func.func @transform_3(%arg0: i32) -> (i32, i32) {
    %c0_i32 = arith.constant 0 : i32
    %c0_i32_0 = arith.constant 0 : i32
    %c0_i32_1 = arith.constant 0 : i32
    return %c0_i32, %c0_i32_0 : i32, i32
  }
  func.func @transform_4(%arg0: i32) -> (i32, i32) {
    %c0_i32 = arith.constant 0 : i32
    %c0_i32_0 = arith.constant 0 : i32
    %c0_i32_1 = arith.constant 0 : i32
    return %c0_i32, %c0_i32_0 : i32, i32
  }
  func.func @transform_5(%arg0: i32) -> (i32, i32, i32) {
    %c0_i32 = arith.constant 0 : i32
    %c0_i32_0 = arith.constant 0 : i32
    %c0_i32_1 = arith.constant 0 : i32
    return %arg0, %c0_i32, %c0_i32_0 : i32, i32, i32
  }
}

</mosaic_0001>

<llo_original>
// kernel: tpu_custom_call.1
$region0: #{tpu_custom_call.1}
  #allocation0 [shape = 'u32[]', space=smem, size = 0x4, offset = 0x4, fixed_abs, tag = 'smem constant byte address 0x4 - core index']
  #allocation1 [shape = 'u32[144,128]{1,0:T(1,128)}', space=vmem, size = 0x12000, scoped, tag = 'internal scratch']
  %s0 = inlined_call_operand.vmem [shape: f32[2,10,290], index: 0, kind: input, shape index: {}]
  %s1 = inlined_call_operand.vmem [shape: f32[9,16,10], index: 1, kind: input, shape index: {}]
  %s2 = inlined_call_operand.vmem [shape: f32[16,1], index: 2, kind: input, shape index: {}]
  %s3 = inlined_call_operand.vmem [shape: f32[10,16], index: 3, kind: input, shape index: {}]
  %s4 = inlined_call_operand.vmem [shape: f32[10,1], index: 4, kind: input, shape index: {}]
  %s5 = inlined_call_operand.vmem [shape: f32[2,10,256], index: 5, kind: output, shape index: {}]
  %s6 = sld [smem:[#allocation0]]
  $region53: #{tpu_custom_call.1} parent=0
    _
  %s8 = ssub.s32 1, %s6
  %s9 = scalar_select 0, %s8, %s6
  loop: start=0, step=1, limit=4
  $region2: #{tpu_custom_call.1} parent=0 // loop_pre_header
    _
  $region3: #{tpu_custom_call.1} parent=0 // loop_header
    %s11 = sphi 0, %s15
    %p12 = scmp.ge.s32.totalorder %s11, 4
    %s21 = sphi 0, %s23
    %s24 = sphi 0, %s21
    %s25 = sphi 0, %s24
    %s41 = sphi 0, %s25
    %s45 = sphi 0, %s45
    %s47 = sphi 0, %s45
    %s48 = sphi 0, %s47
    %s62 = sphi 0, %s48
    %s66 = sphi 0, %s66
    %s68 = sphi 0, %s66
    %s69 = sphi 0, %s68
    %s83 = sphi 0, %s69
    %s87 = sphi 0, %s87
    %s89 = sphi 0, %s87
    %s90 = sphi 0, %s89
    %s104 = sphi 0, %s90
    %s108 = sphi 0, %s108
    %s110 = sphi 0, %s108
    %s111 = sphi 0, %s110
    %s125 = sphi 0, %s111
    %s131 = sphi 0, %s133
    %s134 = sphi 0, %s131
    %s135 = sphi 0, %s134
    %s151 = sphi 0, %s135
  $region4: #{tpu_custom_call.1} parent=0 // loop_header_branch
    %14 = sbr.rel (%p12) target = $region8
  $region5: #{tpu_custom_call.1} parent=0 // loop_body
    %s16 = ssub.s32 %s11, 1
    %s17 = ssub.s32 %s11, 2
    %s18 = sadd.s32 %s11, 1
    %s19 = ssub.s32 %s11, %s18
    %p20 = scmp.eq.s32.totalorder %s19, 0
    %s22 = sadd.s32 %s21, 1
    %s23 = scalar_select %p20, %s21, %s22
    %p26 = pneg %p20
    %p27 = scmp.eq.s32.totalorder %s11, 1
    %p28 = por %p26, %p27
    %p29 = scmp.ne.s32.totalorder %s21, %s24
    %p30 = scmp.eq.s32.totalorder %s11, 0
    %p31 = por %p29, %p30
    %p32 = scmp.ne.s32.totalorder %s21, %s24
    %p33 = scmp.eq.s32.totalorder %s16, 1
    %p34 = por %p32, %p33
    %p35 = scmp.ne.s32.totalorder %s24, %s25
    %p36 = scmp.eq.s32.totalorder %s16, 0
    %p37 = por %p35, %p36
    %p38 = scmp.ne.s32.totalorder %s24, %s25
    %p39 = scmp.eq.s32.totalorder %s17, 1
    %p40 = por %p38, %p39
    %p42 = scmp.ne.s32.totalorder %s25, %s41
    %p43 = scmp.eq.s32.totalorder %s17, 0
    %p44 = por %p42, %p43
    %s46 = sadd.s32 %s45, 1
    %p49 = scmp.eq.s32.totalorder %s11, 1
    %p50 = scmp.ne.s32.totalorder %s45, %s47
    %p51 = scmp.eq.s32.totalorder %s11, 0
    %p52 = por %p50, %p51
    %p53 = scmp.ne.s32.totalorder %s45, %s47
    %p54 = scmp.eq.s32.totalorder %s16, 1
    %p55 = por %p53, %p54
    %p56 = scmp.ne.s32.totalorder %s47, %s48
    %p57 = scmp.eq.s32.totalorder %s16, 0
    %p58 = por %p56, %p57
    %p59 = scmp.ne.s32.totalorder %s47, %s48
    %p60 = scmp.eq.s32.totalorder %s17, 1
    %p61 = por %p59, %p60
    %p63 = scmp.ne.s32.totalorder %s48, %s62
    %p64 = scmp.eq.s32.totalorder %s17, 0
    %p65 = por %p63, %p64
    %s67 = sadd.s32 %s66, 1
    %p70 = scmp.eq.s32.totalorder %s11, 1
    %p71 = scmp.ne.s32.totalorder %s66, %s68
    %p72 = scmp.eq.s32.totalorder %s11, 0
    %p73 = por %p71, %p72
    %p74 = scmp.ne.s32.totalorder %s66, %s68
    %p75 = scmp.eq.s32.totalorder %s16, 1
    %p76 = por %p74, %p75
    %p77 = scmp.ne.s32.totalorder %s68, %s69
    %p78 = scmp.eq.s32.totalorder %s16, 0
    %p79 = por %p77, %p78
    %p80 = scmp.ne.s32.totalorder %s68, %s69
    %p81 = scmp.eq.s32.totalorder %s17, 1
    %p82 = por %p80, %p81
    %p84 = scmp.ne.s32.totalorder %s69, %s83
    %p85 = scmp.eq.s32.totalorder %s17, 0
    %p86 = por %p84, %p85
    %s88 = sadd.s32 %s87, 1
    %p91 = scmp.eq.s32.totalorder %s11, 1
    %p92 = scmp.ne.s32.totalorder %s87, %s89
    %p93 = scmp.eq.s32.totalorder %s11, 0
    %p94 = por %p92, %p93
    %p95 = scmp.ne.s32.totalorder %s87, %s89
    %p96 = scmp.eq.s32.totalorder %s16, 1
    %p97 = por %p95, %p96
    %p98 = scmp.ne.s32.totalorder %s89, %s90
    %p99 = scmp.eq.s32.totalorder %s16, 0
    %p100 = por %p98, %p99
    %p101 = scmp.ne.s32.totalorder %s89, %s90
    %p102 = scmp.eq.s32.totalorder %s17, 1
    %p103 = por %p101, %p102
    %p105 = scmp.ne.s32.totalorder %s90, %s104
    %p106 = scmp.eq.s32.totalorder %s17, 0
    %p107 = por %p105, %p106
    %s109 = sadd.s32 %s108, 1
    %p112 = scmp.eq.s32.totalorder %s11, 1
    %p113 = scmp.ne.s32.totalorder %s108, %s110
    %p114 = scmp.eq.s32.totalorder %s11, 0
    %p115 = por %p113, %p114
    %p116 = scmp.ne.s32.totalorder %s108, %s110
    %p117 = scmp.eq.s32.totalorder %s16, 1
    %p118 = por %p116, %p117
    %p119 = scmp.ne.s32.totalorder %s110, %s111
    %p120 = scmp.eq.s32.totalorder %s16, 0
    %p121 = por %p119, %p120
    %p122 = scmp.ne.s32.totalorder %s110, %s111
    %p123 = scmp.eq.s32.totalorder %s17, 1
    %p124 = por %p122, %p123
    %p126 = scmp.ne.s32.totalorder %s111, %s125
    %p127 = scmp.eq.s32.totalorder %s17, 0
    %p128 = por %p126, %p127
    %s129 = ssub.s32 %s11, %s18
    %p130 = scmp.eq.s32.totalorder %s129, 0
    %s132 = sadd.s32 %s131, 1
    %s133 = scalar_select %p130, %s131, %s132
    %p136 = pneg %p130
    %p137 = scmp.eq.s32.totalorder %s11, 1
    %p138 = por %p136, %p137
    %p139 = scmp.ne.s32.totalorder %s131, %s134
    %p140 = scmp.eq.s32.totalorder %s11, 0
    %p141 = por %p139, %p140
    %p142 = scmp.ne.s32.totalorder %s131, %s134
    %p143 = scmp.eq.s32.totalorder %s16, 1
    %p144 = por %p142, %p143
    %p145 = scmp.ne.s32.totalorder %s134, %s135
    %p146 = scmp.eq.s32.totalorder %s16, 0
    %p147 = por %p145, %p146
    %p148 = scmp.ne.s32.totalorder %s134, %s135
    %p149 = scmp.eq.s32.totalorder %s17, 1
    %p150 = por %p148, %p149
    %p152 = scmp.ne.s32.totalorder %s135, %s151
    %p153 = scmp.eq.s32.totalorder %s17, 0
    %p154 = por %p152, %p153
    %p155 = scmp.le.s32.totalorder 1, %s11
    %p156 = scmp.lt.s32.totalorder %s11, 3
    %p157 = pnand %p155, %p156
    %p158 = pneg %p157
    // Predicated region
    $region9: #{tpu_custom_call.1} parent=5 // pred_check
      _
    $region10: #{tpu_custom_call.1} parent=5 // pred_check_branch
      %160 = sbr.rel (%p157) target = $region12
    $region11: #{tpu_custom_call.1} parent=5 // pred_region
      %s161 = ssub.s32 %s11, 1
      // Predicated region
      $region13: #{tpu_custom_call.1} parent=11 // pred_check
        %p162 = pneg %p58
      $region14: #{tpu_custom_call.1} parent=11 // pred_check_branch
        %164 = sbr.rel (%p162) target = $region16
      $region15: #{tpu_custom_call.1} parent=11 // pred_region
        _
      $region16: #{tpu_custom_call.1} parent=11 // pred_fallthru
        _
      // Predicated region
      $region17: #{tpu_custom_call.1} parent=11 // pred_check
        %p165 = pneg %p79
      $region18: #{tpu_custom_call.1} parent=11 // pred_check_branch
        %167 = sbr.rel (%p165) target = $region20
      $region19: #{tpu_custom_call.1} parent=11 // pred_region
        _
      $region20: #{tpu_custom_call.1} parent=11 // pred_fallthru
        _
      // Predicated region
      $region21: #{tpu_custom_call.1} parent=11 // pred_check
        %p168 = pneg %p100
      $region22: #{tpu_custom_call.1} parent=11 // pred_check_branch
        %170 = sbr.rel (%p168) target = $region24
      $region23: #{tpu_custom_call.1} parent=11 // pred_region
        _
      $region24: #{tpu_custom_call.1} parent=11 // pred_fallthru
        _
      // Predicated region
      $region25: #{tpu_custom_call.1} parent=11 // pred_check
        %p171 = pneg %p121
      $region26: #{tpu_custom_call.1} parent=11 // pred_check_branch
        %173 = sbr.rel (%p171) target = $region28
      $region27: #{tpu_custom_call.1} parent=11 // pred_region
        _
      $region28: #{tpu_custom_call.1} parent=11 // pred_fallthru
        _
    $region12: #{tpu_custom_call.1} parent=5 // pred_fallthru
      _
    %p174 = scmp.lt.s32.totalorder %s11, 2
    // Predicated region
    $region29: #{tpu_custom_call.1} parent=5 // pred_check
      %p175 = pneg %p174
    $region30: #{tpu_custom_call.1} parent=5 // pred_check_branch
      %177 = sbr.rel (%p175) target = $region32
    $region31: #{tpu_custom_call.1} parent=5 // pred_region
      // Predicated region
      $region33: #{tpu_custom_call.1} parent=31 // pred_check
        %p178 = pneg %p31
      $region34: #{tpu_custom_call.1} parent=31 // pred_check_branch
        %180 = sbr.rel (%p178) target = $region36
      $region35: #{tpu_custom_call.1} parent=31 // pred_region
        %p181 = scmp.lt.s32.totalorder %s11, 1
        %s182 = scalar_select %p181, %s11, 1
        %s183 = smul.addr %s182, 6
        %s184 = smul.addr %s183, 8
        %s185 = scalar_lea.vmem %s0, %s184
      $region36: #{tpu_custom_call.1} parent=31 // pred_fallthru
        _
    $region32: #{tpu_custom_call.1} parent=5 // pred_fallthru
      _
    %p186 = scmp.le.s32.totalorder 1, %s11
    %p187 = scmp.lt.s32.totalorder %s11, 3
    %p188 = pnand %p186, %p187
    %p189 = pneg %p188
    // Predicated region
    $region37: #{tpu_custom_call.1} parent=5 // pred_check
      _
    $region38: #{tpu_custom_call.1} parent=5 // pred_check_branch
      %191 = sbr.rel (%p188) target = $region40
    $region39: #{tpu_custom_call.1} parent=5 // pred_region
      %s192 = ssub.s32 %s11, 1
      %p193 = scmp.lt.s32.totalorder %s16, 1
      %s194 = scalar_select %p193, %s16, 1
      %s195 = smul.addr %s194, 6
      %s196 = smul.addr %s195, 8
      %s197 = scalar_lea.vmem %s0, %s196
      %p198 = pneg %p37
      %p199 = pneg %p34
      %p200 = pneg %p58
      %p201 = pneg %p55
      %p202 = pneg %p79
      %p203 = pneg %p76
      %p204 = pneg %p100
      %p205 = pneg %p97
      %p206 = pneg %p121
      %p207 = pneg %p118
      %p208 = pneg %p147
      %p209 = pneg %p144
      %p210 = scmp.lt.s32.totalorder %s16, 1
      %s211 = scalar_select %p210, %s16, 1
      %s212 = smul.addr %s211, 4
      %s213 = smul.addr %s212, 8
      %s214 = scalar_lea.vmem %s5, %s213
      %p215 = scmp.lt.s32.totalorder %s16, 1
      %s216 = scalar_select %p215, %s16, 1
      %s217 = smul.addr %s216, 6
      %s218 = smul.addr %s217, 8
      %s219 = scalar_lea.vmem %s0, %s218
      %p220 = scmp.lt.s32.totalorder %s16, 1
      %s221 = scalar_select %p220, %s16, 1
      %s222 = smul.addr %s221, 4
      %s223 = smul.addr %s222, 8
      %s224 = scalar_lea.vmem %s5, %s223
      %v225 = vlaneseq
      %v226 = vand.u32 %v225, 127
      %v227 = vadd.s32 %v226, 128
      %vm228 = vcmp.lt.s32.totalorder %v226, 0
      %v229 = vsub.s32 0, %v226
      %v230 = vsel %vm228, %v229, %v226
      %v231 = vshrl.u32 %v230, 4
      %v232 = vand.u32 %v230, 15
      %v233 = vsub.s32 0, %v232
      %v234 = vsel %vm228, %v233, %v232
      %vm235 = vcmp.lt.s32.totalorder %v227, 0
      %v236 = vsub.s32 0, %v227
      %v237 = vsel %vm235, %v236, %v227
      %v238 = vshrl.u32 %v237, 4
      %v239 = vand.u32 %v237, 15
      %v240 = vsub.s32 0, %v239
      %v241 = vsel %vm235, %v240, %v239
      %vm242 = vcmp.ne.s32.totalorder %v234, 0
      %vm243 = vcmp.ne.s32.totalorder %v241, 0
      %vm244 = vcmp.lt.s32.totalorder %v234, 0
      %vm245 = vcmp.lt.s32.totalorder %v241, 0
      %vm246 = vmand %vm244, %vm242
      %vm247 = vmand %vm245, %vm243
      %v248 = vadd.s32 %v234, 16
      %v249 = vadd.s32 %v241, 16
      %v250 = vsel %vm246, %v248, %v234
      %v251 = vsel %vm247, %v249, %v241
      %vm252 = vcmp.ne.s32.totalorder %v250, 0
      %vm253 = vcmp.ne.s32.totalorder %v251, 0
      %v254 = vsel %vm252, 1, 0
      %v255 = vsel %vm253, 1, 0
      %v256 = vcvt.s32.f32 %v254
      %v257 = vcvt.s32.f32 %v255
      %vm258 = vcmp.ne.s32.totalorder %v250, 15
      %vm259 = vcmp.ne.s32.totalorder %v251, 15
      %v260 = vsel %vm258, 1, 0
      %v261 = vsel %vm259, 1, 0
      %v262 = vcvt.s32.f32 %v260
      %v263 = vcvt.s32.f32 %v261
      %v264 = vld [vmem:[%s2] sm:$0xff]
      %v265 = vld [vmem:[%s2 + $0x8] sm:$0xff]
      %v266 = vld [vmem:[%s3] sm:$0xff]
      %v267 = vld [vmem:[%s3 + $0x8] sm:$0x3]
      %v268 = vld [vmem:[%s4] sm:$0xff]
      %v269 = vld [vmem:[%s4 + $0x8] sm:$0x3]
      %v270 = vld [vmem:[%s219] sm:$0xff]
      %v271 = vld [vmem:[%s219 + $0x8] sm:$0xff]
      %v272 = vld [vmem:[%s219 + $0x10] sm:$0xff]
      %v273 = vld [vmem:[%s219 + $0x18] sm:$0x3]
      %v274 = vld [vmem:[%s219 + $0x20] sm:$0x3]
      %v275 = vld [vmem:[%s219 + $0x28] sm:$0x3]
      %v276 = vmul.f32 %v270, %v256
      %v277 = vmul.f32 %v271, %v257
      %v278 = vmul.f32 %v273, %v256
      %v279 = vmul.f32 %v274, %v257
      %v280 = vld [vmem:[%s1] sm:$0xff]
      %v281 = vld [vmem:[%s1 + $0x8] sm:$0xff]
      %s282 = scalar_lea.vmem %s1, 16
      %v283 = vld [vmem:[%s282] sm:$0xff]
      %v284 = vld [vmem:[%s282 + $0x8] sm:$0xff]
      %291 = vrot.lane.b32.xlu0 %v270, 127
      %v292 = vpop.permute.xlu0 %291
      %293 = vrot.lane.b32.xlu0 %v271, 127
      %v294 = vpop.permute.xlu0 %293
      %295 = vrot.lane.b32.xlu0 %v272, 127
      %v296 = vpop.permute.xlu0 %295
      %297 = vrot.lane.b32.xlu0 %v273, 127
      %v298 = vpop.permute.xlu0 %297
      %299 = vrot.lane.b32.xlu0 %v274, 127
      %v300 = vpop.permute.xlu0 %299
      %301 = vrot.lane.b32.xlu0 %v275, 127
      %v302 = vpop.permute.xlu0 %301
      %vm303 = vcmask 1039360
      %v304 = vsel %vm303, %v292, %v294
      %v305 = vsel %vm303, %v294, %v296
      %v306 = vsel %vm303, %v298, %v300
      %v307 = vsel %vm303, %v300, %v302
      %vm310 = vcmask 80896
      %v312 = vsel %vm310, %v283, 0
      %v315 = vsel %vm310, %v284, 0
      %vm317 = vcmask 1041408
      %v318 = vsel %vm317, %v306, 0
      %v320 = vsel %vm317, %v307, 0
      %322 = vmatprep.subr.mxu0 0.0
      %323 = vmatpush1.msra.mxu0 0.0
      %324 = vmatprep.subr.mxu0 0.0
      %325 = vmatpush1.msra.mxu0 0.0
      %326 = vmatprep.subr.mxu0 0.0
      %327 = vmatpush1.msra.mxu0 0.0
      %328 = vmatprep.subr.mxu0 0.0
      %329 = vmatpush1.msra.mxu0 0.0
      %330 = vmatprep.subr.mxu0 0.0
      %331 = vmatpush1.msra.mxu0 0.0
      %332 = vmatprep.subr.mxu0 0.0
      %333 = vmatpush1.msra.mxu0 0.0
      %334 = vmatprep.subr.mxu0 0.0
      %335 = vmatpush1.msra.mxu0 0.0
      %336 = vmatprep.subr.mxu0 0.0
      %337 = vmatpush1.msra.mxu0 0.0
      %338 = vmatprep.subr.mxu0 0.0
      %339 = vmatpush1.msra.mxu0 0.0
      %340 = vmatprep.subr.mxu0 0.0
      %341 = vmatpush1.msra.mxu0 0.0
      %342 = vmatprep.subr.mxu0 0.0
      %343 = vmatpush1.msra.mxu0 0.0
      %344 = vmatprep.subr.mxu0 0.0
      %345 = vmatpush1.msra.mxu0 0.0
      %346 = vmatprep.subr.mxu0 0.0
      %347 = vmatpush1.msra.mxu0 0.0
      %348 = vmatprep.subr.mxu0 0.0
      %349 = vmatpush1.msra.mxu0 0.0
      %350 = vmatprep.subr.mxu0 %v320
      %351 = vmatpush1.msra.mxu0 %v318
      %352 = vmatprep.subr.mxu0 %v305
      %353 = vmatpush1.msra.mxu0 %v304
      %354 = vmatprep.subr.mxu0 0.0
      %355 = vmatpush2.msra.mxu0 0.0
      %356 = vmatprep.subr.mxu0 0.0
      %357 = vmatpush2.msra.mxu0 0.0
      %358 = vmatprep.subr.mxu0 0.0
      %359 = vmatpush2.msra.mxu0 0.0
      %360 = vmatprep.subr.mxu0 0.0
      %361 = vmatpush2.msra.mxu0 0.0
      %362 = vmatprep.subr.mxu0 0.0
      %363 = vmatpush2.msra.mxu0 0.0
      %364 = vmatprep.subr.mxu0 0.0
      %365 = vmatpush2.msra.mxu0 0.0
      %366 = vmatprep.subr.mxu0 0.0
      %367 = vmatpush2.msra.mxu0 0.0
      %368 = vmatprep.subr.mxu0 0.0
      %369 = vmatpush2.msra.mxu0 0.0
      %370 = vmatprep.subr.mxu0 0.0
      %371 = vmatpush2.msra.mxu0 0.0
      %372 = vmatprep.subr.mxu0 0.0
      %373 = vmatpush2.msra.mxu0 0.0
      %374 = vmatprep.subr.mxu0 0.0
      %375 = vmatpush2.msra.mxu0 0.0
      %376 = vmatprep.subr.mxu0 0.0
      %377 = vmatpush2.msra.mxu0 0.0
      %378 = vmatprep.subr.mxu0 0.0
      %379 = vmatpush2.msra.mxu0 0.0
      %380 = vmatprep.subr.mxu0 0.0
      %381 = vmatpush2.msra.mxu0 0.0
      %382 = vmatprep.subr.mxu0 0.0
      %383 = vmatpush2.msra.mxu0 0.0
      %384 = vmatprep.subr.mxu0 0.0
      %385 = vmatpush2.msra.mxu0 0.0
      %386 = vmatprep.mubr.f32.mxu0 0.0
      %387 = vmatmul.mubr.f32.gmra.mxu0 %v312
      %v388 = vpop.f32.mrf.mxu0
      %v389 = vadd.f32 0.0, %v388
      %v390 = vpop.f32.mrf.mxu0
      %v391 = vadd.f32 0.0, %v390
      %392 = vmatprep.mubr.f32.mxu0 0.0
      %393 = vmatmul.mubr.f32.gmra.mxu0 %v315
      %v394 = vpop.f32.mrf.mxu0
      %v395 = vadd.f32 0.0, %v394
      %v396 = vpop.f32.mrf.mxu0
      %v397 = vadd.f32 0.0, %v396
      %398 = vdwg.mxu0
      %v400 = vsel %vm310, %v280, 0
      %v403 = vsel %vm310, %v281, 0
      %v406 = vsel %vm317, %v278, 0
      %v409 = vsel %vm317, %v279, 0
      %411 = vmatprep.subr.mxu0 0.0
      %412 = vmatpush1.msra.mxu0 0.0
      %413 = vmatprep.subr.mxu0 0.0
      %414 = vmatpush1.msra.mxu0 0.0
      %415 = vmatprep.subr.mxu0 0.0
      %416 = vmatpush1.msra.mxu0 0.0
      %417 = vmatprep.subr.mxu0 0.0
      %418 = vmatpush1.msra.mxu0 0.0
      %419 = vmatprep.subr.mxu0 0.0
      %420 = vmatpush1.msra.mxu0 0.0
      %421 = vmatprep.subr.mxu0 0.0
      %422 = vmatpush1.msra.mxu0 0.0
      %423 = vmatprep.subr.mxu0 0.0
      %424 = vmatpush1.msra.mxu0 0.0
      %425 = vmatprep.subr.mxu0 0.0
      %426 = vmatpush1.msra.mxu0 0.0
      %427 = vmatprep.subr.mxu0 0.0
      %428 = vmatpush1.msra.mxu0 0.0
      %429 = vmatprep.subr.mxu0 0.0
      %430 = vmatpush1.msra.mxu0 0.0
      %431 = vmatprep.subr.mxu0 0.0
      %432 = vmatpush1.msra.mxu0 0.0
      %433 = vmatprep.subr.mxu0 0.0
      %434 = vmatpush1.msra.mxu0 0.0
      %435 = vmatprep.subr.mxu0 0.0
      %436 = vmatpush1.msra.mxu0 0.0
      %437 = vmatprep.subr.mxu0 0.0
      %438 = vmatpush1.msra.mxu0 0.0
      %439 = vmatprep.subr.mxu0 %v409
      %440 = vmatpush1.msra.mxu0 %v406
      %441 = vmatprep.subr.mxu0 %v277
      %442 = vmatpush1.msra.mxu0 %v276
      %443 = vmatprep.subr.mxu0 0.0
      %444 = vmatpush2.msra.mxu0 0.0
      %445 = vmatprep.subr.mxu0 0.0
      %446 = vmatpush2.msra.mxu0 0.0
      %447 = vmatprep.subr.mxu0 0.0
      %448 = vmatpush2.msra.mxu0 0.0
      %449 = vmatprep.subr.mxu0 0.0
      %450 = vmatpush2.msra.mxu0 0.0
      %451 = vmatprep.subr.mxu0 0.0
      %452 = vmatpush2.msra.mxu0 0.0
      %453 = vmatprep.subr.mxu0 0.0
      %454 = vmatpush2.msra.mxu0 0.0
      %455 = vmatprep.subr.mxu0 0.0
      %456 = vmatpush2.msra.mxu0 0.0
      %457 = vmatprep.subr.mxu0 0.0
      %458 = vmatpush2.msra.mxu0 0.0
      %459 = vmatprep.subr.mxu0 0.0
      %460 = vmatpush2.msra.mxu0 0.0
      %461 = vmatprep.subr.mxu0 0.0
      %462 = vmatpush2.msra.mxu0 0.0
      %463 = vmatprep.subr.mxu0 0.0
      %464 = vmatpush2.msra.mxu0 0.0
      %465 = vmatprep.subr.mxu0 0.0
      %466 = vmatpush2.msra.mxu0 0.0
      %467 = vmatprep.subr.mxu0 0.0
      %468 = vmatpush2.msra.mxu0 0.0
      %469 = vmatprep.subr.mxu0 0.0
      %470 = vmatpush2.msra.mxu0 0.0
      %471 = vmatprep.subr.mxu0 0.0
      %472 = vmatpush2.msra.mxu0 0.0
      %473 = vmatprep.subr.mxu0 0.0
      %474 = vmatpush2.msra.mxu0 0.0
      %475 = vmatprep.mubr.f32.mxu0 0.0
      %476 = vmatmul.mubr.f32.gmra.mxu0 %v400
      %v477 = vpop.f32.mrf.mxu0
      %v478 = vadd.f32 %v389, %v477
      %v479 = vpop.f32.mrf.mxu0
      %v480 = vadd.f32 %v391, %v479
      %481 = vmatprep.mubr.f32.mxu0 0.0
      %482 = vmatmul.mubr.f32.gmra.mxu0 %v403
      %v483 = vpop.f32.mrf.mxu0
      %v484 = vadd.f32 %v395, %v483
      %v485 = vpop.f32.mrf.mxu0
      %v486 = vadd.f32 %v397, %v485
      %487 = vdwg.mxu0
      %490 = vrot.lane.b32.xlu0 %v262, 2
      %v491 = vpop.permute.xlu0 %490
      %492 = vrot.lane.b32.xlu0 %v263, 2
      %v493 = vpop.permute.xlu0 %492
      %vm494 = vcmask 15360
      %v495 = vsel %vm494, %v491, %v493
      %v499 = vmul.f32 %v270, %v491
      %v500 = vmul.f32 %v271, %v495
      %v501 = vmul.f32 %v272, %v493
      %v502 = vmul.f32 %v273, %v491
      %v503 = vmul.f32 %v274, %v495
      %v504 = vmul.f32 %v275, %v493
      %s505 = scalar_lea.vmem %s1, 32
      %v506 = vld [vmem:[%s505] sm:$0xff]
      %v507 = vld [vmem:[%s505 + $0x8] sm:$0xff]
      %514 = vrot.lane.b32.xlu0 %v499, 126
      %v515 = vpop.permute.xlu0 %514
      %516 = vrot.lane.b32.xlu0 %v500, 126
      %v517 = vpop.permute.xlu0 %516
      %518 = vrot.lane.b32.xlu0 %v501, 126
      %v519 = vpop.permute.xlu0 %518
      %520 = vrot.lane.b32.xlu0 %v502, 126
      %v521 = vpop.permute.xlu0 %520
      %522 = vrot.lane.b32.xlu0 %v503, 126
      %v523 = vpop.permute.xlu0 %522
      %524 = vrot.lane.b32.xlu0 %v504, 126
      %v525 = vpop.permute.xlu0 %524
      %vm526 = vcmask 1031168
      %v527 = vsel %vm526, %v515, %v517
      %v528 = vsel %vm526, %v517, %v519
      %v529 = vsel %vm526, %v521, %v523
      %v530 = vsel %vm526, %v523, %v525
      %v534 = vsel %vm310, %v506, 0
      %v537 = vsel %vm310, %v507, 0
      %v539 = vsel %vm317, %v529, 0
      %v541 = vsel %vm317, %v530, 0
      %543 = vmatprep.subr.mxu0 0.0
      %544 = vmatpush1.msra.mxu0 0.0
      %545 = vmatprep.subr.mxu0 0.0
      %546 = vmatpush1.msra.mxu0 0.0
      %547 = vmatprep.subr.mxu0 0.0
      %548 = vmatpush1.msra.mxu0 0.0
      %549 = vmatprep.subr.mxu0 0.0
      %550 = vmatpush1.msra.mxu0 0.0
      %551 = vmatprep.subr.mxu0 0.0
      %552 = vmatpush1.msra.mxu0 0.0
      %553 = vmatprep.subr.mxu0 0.0
      %554 = vmatpush1.msra.mxu0 0.0
      %555 = vmatprep.subr.mxu0 0.0
      %556 = vmatpush1.msra.mxu0 0.0
      %557 = vmatprep.subr.mxu0 0.0
      %558 = vmatpush1.msra.mxu0 0.0
      %559 = vmatprep.subr.mxu0 0.0
      %560 = vmatpush1.msra.mxu0 0.0
      %561 = vmatprep.subr.mxu0 0.0
      %562 = vmatpush1.msra.mxu0 0.0
      %563 = vmatprep.subr.mxu0 0.0
      %564 = vmatpush1.msra.mxu0 0.0
      %565 = vmatprep.subr.mxu0 0.0
      %566 = vmatpush1.msra.mxu0 0.0
      %567 = vmatprep.subr.mxu0 0.0
      %568 = vmatpush1.msra.mxu0 0.0
      %569 = vmatprep.subr.mxu0 0.0
      %570 = vmatpush1.msra.mxu0 0.0
      %571 = vmatprep.subr.mxu0 %v541
      %572 = vmatpush1.msra.mxu0 %v539
      %573 = vmatprep.subr.mxu0 %v528
      %574 = vmatpush1.msra.mxu0 %v527
      %575 = vmatprep.subr.mxu0 0.0
      %576 = vmatpush2.msra.mxu0 0.0
      %577 = vmatprep.subr.mxu0 0.0
      %578 = vmatpush2.msra.mxu0 0.0
      %579 = vmatprep.subr.mxu0 0.0
      %580 = vmatpush2.msra.mxu0 0.0
      %581 = vmatprep.subr.mxu0 0.0
      %582 = vmatpush2.msra.mxu0 0.0
      %583 = vmatprep.subr.mxu0 0.0
      %584 = vmatpush2.msra.mxu0 0.0
      %585 = vmatprep.subr.mxu0 0.0
      %586 = vmatpush2.msra.mxu0 0.0
      %587 = vmatprep.subr.mxu0 0.0
      %588 = vmatpush2.msra.mxu0 0.0
      %589 = vmatprep.subr.mxu0 0.0
      %590 = vmatpush2.msra.mxu0 0.0
      %591 = vmatprep.subr.mxu0 0.0
      %592 = vmatpush2.msra.mxu0 0.0
      %593 = vmatprep.subr.mxu0 0.0
      %594 = vmatpush2.msra.mxu0 0.0
      %595 = vmatprep.subr.mxu0 0.0
      %596 = vmatpush2.msra.mxu0 0.0
      %597 = vmatprep.subr.mxu0 0.0
      %598 = vmatpush2.msra.mxu0 0.0
      %599 = vmatprep.subr.mxu0 0.0
      %600 = vmatpush2.msra.mxu0 0.0
      %601 = vmatprep.subr.mxu0 0.0
      %602 = vmatpush2.msra.mxu0 0.0
      %603 = vmatprep.subr.mxu0 0.0
      %604 = vmatpush2.msra.mxu0 0.0
      %605 = vmatprep.subr.mxu0 0.0
      %606 = vmatpush2.msra.mxu0 0.0
      %607 = vmatprep.mubr.f32.mxu0 0.0
      %608 = vmatmul.mubr.f32.gmra.mxu0 %v534
      %v609 = vpop.f32.mrf.mxu0
      %v610 = vadd.f32 0.0, %v609
      %v611 = vpop.f32.mrf.mxu0
      %v612 = vadd.f32 0.0, %v611
      %613 = vmatprep.mubr.f32.mxu0 0.0
      %614 = vmatmul.mubr.f32.gmra.mxu0 %v537
      %v615 = vpop.f32.mrf.mxu0
      %v616 = vadd.f32 0.0, %v615
      %v617 = vpop.f32.mrf.mxu0
      %v618 = vadd.f32 0.0, %v617
      %619 = vdwg.mxu0
      %v620 = vadd.f32 %v478, %v610
      %v621 = vadd.f32 %v480, %v612
      %v622 = vadd.f32 %v484, %v616
      %v623 = vadd.f32 %v486, %v618
      %626 = vrot.lane.b32.xlu0 %v256, 16
      %v627 = vpop.permute.xlu0 %626
      %628 = vrot.lane.b32.xlu0 %v257, 16
      %v629 = vpop.permute.xlu0 %628
      %vm630 = vcmask 130048
      %v631 = vsel %vm630, %v627, %v629
      %v635 = vmul.f32 %v270, %v627
      %v636 = vmul.f32 %v271, %v631
      %v637 = vmul.f32 %v272, %v629
      %v638 = vmul.f32 %v273, %v627
      %v639 = vmul.f32 %v274, %v631
      %v640 = vmul.f32 %v275, %v629
      %s641 = scalar_lea.vmem %s1, 48
      %v642 = vld [vmem:[%s641] sm:$0xff]
      %v643 = vld [vmem:[%s641 + $0x8] sm:$0xff]
      %650 = vrot.lane.b32.xlu0 %v635, 112
      %v651 = vpop.permute.xlu0 %650
      %652 = vrot.lane.b32.xlu0 %v636, 112
      %v653 = vpop.permute.xlu0 %652
      %654 = vrot.lane.b32.xlu0 %v637, 112
      %v655 = vpop.permute.xlu0 %654
      %656 = vrot.lane.b32.xlu0 %v638, 112
      %v657 = vpop.permute.xlu0 %656
      %658 = vrot.lane.b32.xlu0 %v639, 112
      %v659 = vpop.permute.xlu0 %658
      %660 = vrot.lane.b32.xlu0 %v640, 112
      %v661 = vpop.permute.xlu0 %660
      %vm662 = vcmask 916480
      %v663 = vsel %vm662, %v651, %v653
      %v664 = vsel %vm662, %v653, %v655
      %v665 = vsel %vm662, %v657, %v659
      %v666 = vsel %vm662, %v659, %v661
      %v670 = vsel %vm310, %v642, 0
      %v673 = vsel %vm310, %v643, 0
      %v675 = vsel %vm317, %v665, 0
      %v677 = vsel %vm317, %v666, 0
      %679 = vmatprep.subr.mxu0 0.0
      %680 = vmatpush1.msra.mxu0 0.0
      %681 = vmatprep.subr.mxu0 0.0
      %682 = vmatpush1.msra.mxu0 0.0
      %683 = vmatprep.subr.mxu0 0.0
      %684 = vmatpush1.msra.mxu0 0.0
      %685 = vmatprep.subr.mxu0 0.0
      %686 = vmatpush1.msra.mxu0 0.0
      %687 = vmatprep.subr.mxu0 0.0
      %688 = vmatpush1.msra.mxu0 0.0
      %689 = vmatprep.subr.mxu0 0.0
      %690 = vmatpush1.msra.mxu0 0.0
      %691 = vmatprep.subr.mxu0 0.0
      %692 = vmatpush1.msra.mxu0 0.0
      %693 = vmatprep.subr.mxu0 0.0
      %694 = vmatpush1.msra.mxu0 0.0
      %695 = vmatprep.subr.mxu0 0.0
      %696 = vmatpush1.msra.mxu0 0.0
      %697 = vmatprep.subr.mxu0 0.0
      %698 = vmatpush1.msra.mxu0 0.0
      %699 = vmatprep.subr.mxu0 0.0
      %700 = vmatpush1.msra.mxu0 0.0
      %701 = vmatprep.subr.mxu0 0.0
      %702 = vmatpush1.msra.mxu0 0.0
      %703 = vmatprep.subr.mxu0 0.0
      %704 = vmatpush1.msra.mxu0 0.0
      %705 = vmatprep.subr.mxu0 0.0
      %706 = vmatpush1.msra.mxu0 0.0
      %707 = vmatprep.subr.mxu0 %v677
      %708 = vmatpush1.msra.mxu0 %v675
      %709 = vmatprep.subr.mxu0 %v664
      %710 = vmatpush1.msra.mxu0 %v663
      %711 = vmatprep.subr.mxu0 0.0
      %712 = vmatpush2.msra.mxu0 0.0
      %713 = vmatprep.subr.mxu0 0.0
      %714 = vmatpush2.msra.mxu0 0.0
      %715 = vmatprep.subr.mxu0 0.0
      %716 = vmatpush2.msra.mxu0 0.0
      %717 = vmatprep.subr.mxu0 0.0
      %718 = vmatpush2.msra.mxu0 0.0
      %719 = vmatprep.subr.mxu0 0.0
      %720 = vmatpush2.msra.mxu0 0.0
      %721 = vmatprep.subr.mxu0 0.0
      %722 = vmatpush2.msra.mxu0 0.0
      %723 = vmatprep.subr.mxu0 0.0
      %724 = vmatpush2.msra.mxu0 0.0
      %725 = vmatprep.subr.mxu0 0.0
      %726 = vmatpush2.msra.mxu0 0.0
      %727 = vmatprep.subr.mxu0 0.0
      %728 = vmatpush2.msra.mxu0 0.0
      %729 = vmatprep.subr.mxu0 0.0
      %730 = vmatpush2.msra.mxu0 0.0
      %731 = vmatprep.subr.mxu0 0.0
      %732 = vmatpush2.msra.mxu0 0.0
      %733 = vmatprep.subr.mxu0 0.0
      %734 = vmatpush2.msra.mxu0 0.0
      %735 = vmatprep.subr.mxu0 0.0
      %736 = vmatpush2.msra.mxu0 0.0
      %737 = vmatprep.subr.mxu0 0.0
      %738 = vmatpush2.msra.mxu0 0.0
      %739 = vmatprep.subr.mxu0 0.0
      %740 = vmatpush2.msra.mxu0 0.0
      %741 = vmatprep.subr.mxu0 0.0
      %742 = vmatpush2.msra.mxu0 0.0
      %743 = vmatprep.mubr.f32.mxu0 0.0
      %744 = vmatmul.mubr.f32.gmra.mxu0 %v670
      %v745 = vpop.f32.mrf.mxu0
      %v746 = vadd.f32 0.0, %v745
      %v747 = vpop.f32.mrf.mxu0
      %v748 = vadd.f32 0.0, %v747
      %749 = vmatprep.mubr.f32.mxu0 0.0
      %750 = vmatmul.mubr.f32.gmra.mxu0 %v673
      %v751 = vpop.f32.mrf.mxu0
      %v752 = vadd.f32 0.0, %v751
      %v753 = vpop.f32.mrf.mxu0
      %v754 = vadd.f32 0.0, %v753
      %755 = vdwg.mxu0
      %v756 = vadd.f32 %v620, %v746
      %v757 = vadd.f32 %v621, %v748
      %v758 = vadd.f32 %v622, %v752
      %v759 = vadd.f32 %v623, %v754
      %s760 = scalar_lea.vmem %s1, 64
      %v761 = vld [vmem:[%s760] sm:$0xff]
      %v762 = vld [vmem:[%s760 + $0x8] sm:$0xff]
      %763 = vrot.lane.b32.xlu0 %v270, 111
      %v764 = vpop.permute.xlu0 %763
      %765 = vrot.lane.b32.xlu0 %v271, 111
      %v766 = vpop.permute.xlu0 %765
      %767 = vrot.lane.b32.xlu0 %v272, 111
      %v768 = vpop.permute.xlu0 %767
      %769 = vrot.lane.b32.xlu0 %v273, 111
      %v770 = vpop.permute.xlu0 %769
      %771 = vrot.lane.b32.xlu0 %v274, 111
      %v772 = vpop.permute.xlu0 %771
      %773 = vrot.lane.b32.xlu0 %v275, 111
      %v774 = vpop.permute.xlu0 %773
      %vm775 = vcmask 908288
      %v776 = vsel %vm775, %v764, %v766
      %v777 = vsel %vm775, %v766, %v768
      %v778 = vsel %vm775, %v770, %v772
      %v779 = vsel %vm775, %v772, %v774
      %v783 = vsel %vm310, %v761, 0
      %v786 = vsel %vm310, %v762, 0
      %v788 = vsel %vm317, %v778, 0
      %v790 = vsel %vm317, %v779, 0
      %792 = vmatprep.subr.mxu0 0.0
      %793 = vmatpush1.msra.mxu0 0.0
      %794 = vmatprep.subr.mxu0 0.0
      %795 = vmatpush1.msra.mxu0 0.0
      %796 = vmatprep.subr.mxu0 0.0
      %797 = vmatpush1.msra.mxu0 0.0
      %798 = vmatprep.subr.mxu0 0.0
      %799 = vmatpush1.msra.mxu0 0.0
      %800 = vmatprep.subr.mxu0 0.0
      %801 = vmatpush1.msra.mxu0 0.0
      %802 = vmatprep.subr.mxu0 0.0
      %803 = vmatpush1.msra.mxu0 0.0
      %804 = vmatprep.subr.mxu0 0.0
      %805 = vmatpush1.msra.mxu0 0.0
      %806 = vmatprep.subr.mxu0 0.0
      %807 = vmatpush1.msra.mxu0 0.0
      %808 = vmatprep.subr.mxu0 0.0
      %809 = vmatpush1.msra.mxu0 0.0
      %810 = vmatprep.subr.mxu0 0.0
      %811 = vmatpush1.msra.mxu0 0.0
      %812 = vmatprep.subr.mxu0 0.0
      %813 = vmatpush1.msra.mxu0 0.0
      %814 = vmatprep.subr.mxu0 0.0
      %815 = vmatpush1.msra.mxu0 0.0
      %816 = vmatprep.subr.mxu0 0.0
      %817 = vmatpush1.msra.mxu0 0.0
      %818 = vmatprep.subr.mxu0 0.0
      %819 = vmatpush1.msra.mxu0 0.0
      %820 = vmatprep.subr.mxu0 %v790
      %821 = vmatpush1.msra.mxu0 %v788
      %822 = vmatprep.subr.mxu0 %v777
      %823 = vmatpush1.msra.mxu0 %v776
      %824 = vmatprep.subr.mxu0 0.0
      %825 = vmatpush2.msra.mxu0 0.0
      %826 = vmatprep.subr.mxu0 0.0
      %827 = vmatpush2.msra.mxu0 0.0
      %828 = vmatprep.subr.mxu0 0.0
      %829 = vmatpush2.msra.mxu0 0.0
      %830 = vmatprep.subr.mxu0 0.0
      %831 = vmatpush2.msra.mxu0 0.0
      %832 = vmatprep.subr.mxu0 0.0
      %833 = vmatpush2.msra.mxu0 0.0
      %834 = vmatprep.subr.mxu0 0.0
      %835 = vmatpush2.msra.mxu0 0.0
      %836 = vmatprep.subr.mxu0 0.0
      %837 = vmatpush2.msra.mxu0 0.0
      %838 = vmatprep.subr.mxu0 0.0
      %839 = vmatpush2.msra.mxu0 0.0
      %840 = vmatprep.subr.mxu0 0.0
      %841 = vmatpush2.msra.mxu0 0.0
      %842 = vmatprep.subr.mxu0 0.0
      %843 = vmatpush2.msra.mxu0 0.0
      %844 = vmatprep.subr.mxu0 0.0
      %845 = vmatpush2.msra.mxu0 0.0
      %846 = vmatprep.subr.mxu0 0.0
      %847 = vmatpush2.msra.mxu0 0.0
      %848 = vmatprep.subr.mxu0 0.0
      %849 = vmatpush2.msra.mxu0 0.0
      %850 = vmatprep.subr.mxu0 0.0
      %851 = vmatpush2.msra.mxu0 0.0
      %852 = vmatprep.subr.mxu0 0.0
      %853 = vmatpush2.msra.mxu0 0.0
      %854 = vmatprep.subr.mxu0 0.0
      %855 = vmatpush2.msra.mxu0 0.0
      %856 = vmatprep.mubr.f32.mxu0 0.0
      %857 = vmatmul.mubr.f32.gmra.mxu0 %v783
      %v858 = vpop.f32.mrf.mxu0
      %v859 = vadd.f32 0.0, %v858
      %v860 = vpop.f32.mrf.mxu0
      %v861 = vadd.f32 0.0, %v860
      %862 = vmatprep.mubr.f32.mxu0 0.0
      %863 = vmatmul.mubr.f32.gmra.mxu0 %v786
      %v864 = vpop.f32.mrf.mxu0
      %v865 = vadd.f32 0.0, %v864
      %v866 = vpop.f32.mrf.mxu0
      %v867 = vadd.f32 0.0, %v866
      %868 = vdwg.mxu0
      %v869 = vadd.f32 %v756, %v859
      %v870 = vadd.f32 %v757, %v861
      %v871 = vadd.f32 %v758, %v865
      %v872 = vadd.f32 %v759, %v867
      %873 = vrot.lane.b32.xlu0 %v262, 18
      %v874 = vpop.permute.xlu0 %873
      %875 = vrot.lane.b32.xlu0 %v263, 18
      %v876 = vpop.permute.xlu0 %875
      %vm877 = vcmask 146432
      %v878 = vsel %vm877, %v874, %v876
      %v882 = vmul.f32 %v270, %v874
      %v883 = vmul.f32 %v271, %v878
      %v884 = vmul.f32 %v272, %v876
      %v885 = vmul.f32 %v273, %v874
      %v886 = vmul.f32 %v274, %v878
      %v887 = vmul.f32 %v275, %v876
      %s888 = scalar_lea.vmem %s1, 80
      %v889 = vld [vmem:[%s888] sm:$0xff]
      %v890 = vld [vmem:[%s888 + $0x8] sm:$0xff]
      %897 = vrot.lane.b32.xlu0 %v882, 110
      %v898 = vpop.permute.xlu0 %897
      %899 = vrot.lane.b32.xlu0 %v883, 110
      %v900 = vpop.permute.xlu0 %899
      %901 = vrot.lane.b32.xlu0 %v884, 110
      %v902 = vpop.permute.xlu0 %901
      %903 = vrot.lane.b32.xlu0 %v885, 110
      %v904 = vpop.permute.xlu0 %903
      %905 = vrot.lane.b32.xlu0 %v886, 110
      %v906 = vpop.permute.xlu0 %905
      %907 = vrot.lane.b32.xlu0 %v887, 110
      %v908 = vpop.permute.xlu0 %907
      %vm909 = vcmask 900096
      %v910 = vsel %vm909, %v898, %v900
      %v911 = vsel %vm909, %v900, %v902
      %v912 = vsel %vm909, %v904, %v906
      %v913 = vsel %vm909, %v906, %v908
      %v917 = vsel %vm310, %v889, 0
      %v920 = vsel %vm310, %v890, 0
      %v922 = vsel %vm317, %v912, 0
      %v924 = vsel %vm317, %v913, 0
      %926 = vmatprep.subr.mxu0 0.0
      %927 = vmatpush1.msra.mxu0 0.0
      %928 = vmatprep.subr.mxu0 0.0
      %929 = vmatpush1.msra.mxu0 0.0
      %930 = vmatprep.subr.mxu0 0.0
      %931 = vmatpush1.msra.mxu0 0.0
      %932 = vmatprep.subr.mxu0 0.0
      %933 = vmatpush1.msra.mxu0 0.0
      %934 = vmatprep.subr.mxu0 0.0
      %935 = vmatpush1.msra.mxu0 0.0
      %936 = vmatprep.subr.mxu0 0.0
      %937 = vmatpush1.msra.mxu0 0.0
      %938 = vmatprep.subr.mxu0 0.0
      %939 = vmatpush1.msra.mxu0 0.0
      %940 = vmatprep.subr.mxu0 0.0
      %941 = vmatpush1.msra.mxu0 0.0
      %942 = vmatprep.subr.mxu0 0.0
      %943 = vmatpush1.msra.mxu0 0.0
      %944 = vmatprep.subr.mxu0 0.0
      %945 = vmatpush1.msra.mxu0 0.0
      %946 = vmatprep.subr.mxu0 0.0
      %947 = vmatpush1.msra.mxu0 0.0
      %948 = vmatprep.subr.mxu0 0.0
      %949 = vmatpush1.msra.mxu0 0.0
      %950 = vmatprep.subr.mxu0 0.0
      %951 = vmatpush1.msra.mxu0 0.0
      %952 = vmatprep.subr.mxu0 0.0
      %953 = vmatpush1.msra.mxu0 0.0
      %954 = vmatprep.subr.mxu0 %v924
      %955 = vmatpush1.msra.mxu0 %v922
      %956 = vmatprep.subr.mxu0 %v911
      %957 = vmatpush1.msra.mxu0 %v910
      %958 = vmatprep.subr.mxu0 0.0
      %959 = vmatpush2.msra.mxu0 0.0
      %960 = vmatprep.subr.mxu0 0.0
      %961 = vmatpush2.msra.mxu0 0.0
      %962 = vmatprep.subr.mxu0 0.0
      %963 = vmatpush2.msra.mxu0 0.0
      %964 = vmatprep.subr.mxu0 0.0
      %965 = vmatpush2.msra.mxu0 0.0
      %966 = vmatprep.subr.mxu0 0.0
      %967 = vmatpush2.msra.mxu0 0.0
      %968 = vmatprep.subr.mxu0 0.0
      %969 = vmatpush2.msra.mxu0 0.0
      %970 = vmatprep.subr.mxu0 0.0
      %971 = vmatpush2.msra.mxu0 0.0
      %972 = vmatprep.subr.mxu0 0.0
      %973 = vmatpush2.msra.mxu0 0.0
      %974 = vmatprep.subr.mxu0 0.0
      %975 = vmatpush2.msra.mxu0 0.0
      %976 = vmatprep.subr.mxu0 0.0
      %977 = vmatpush2.msra.mxu0 0.0
      %978 = vmatprep.subr.mxu0 0.0
      %979 = vmatpush2.msra.mxu0 0.0
      %980 = vmatprep.subr.mxu0 0.0
      %981 = vmatpush2.msra.mxu0 0.0
      %982 = vmatprep.subr.mxu0 0.0
      %983 = vmatpush2.msra.mxu0 0.0
      %984 = vmatprep.subr.mxu0 0.0
      %985 = vmatpush2.msra.mxu0 0.0
      %986 = vmatprep.subr.mxu0 0.0
      %987 = vmatpush2.msra.mxu0 0.0
      %988 = vmatprep.subr.mxu0 0.0
      %989 = vmatpush2.msra.mxu0 0.0
      %990 = vmatprep.mubr.f32.mxu0 0.0
      %991 = vmatmul.mubr.f32.gmra.mxu0 %v917
      %v992 = vpop.f32.mrf.mxu0
      %v993 = vadd.f32 0.0, %v992
      %v994 = vpop.f32.mrf.mxu0
      %v995 = vadd.f32 0.0, %v994
      %996 = vmatprep.mubr.f32.mxu0 0.0
      %997 = vmatmul.mubr.f32.gmra.mxu0 %v920
      %v998 = vpop.f32.mrf.mxu0
      %v999 = vadd.f32 0.0, %v998
      %v1000 = vpop.f32.mrf.mxu0
      %v1001 = vadd.f32 0.0, %v1000
      %1002 = vdwg.mxu0
      %v1003 = vadd.f32 %v869, %v993
      %v1004 = vadd.f32 %v870, %v995
      %v1005 = vadd.f32 %v871, %v999
      %v1006 = vadd.f32 %v872, %v1001
      %1007 = vrot.lane.b32.xlu0 %v256, 32
      %v1008 = vpop.permute.xlu0 %1007
      %1009 = vrot.lane.b32.xlu0 %v257, 32
      %v1010 = vpop.permute.xlu0 %1009
      %vm1011 = vcmask 261120
      %v1012 = vsel %vm1011, %v1008, %v1010
      %v1016 = vmul.f32 %v270, %v1008
      %v1017 = vmul.f32 %v271, %v1012
      %v1018 = vmul.f32 %v272, %v1010
      %v1019 = vmul.f32 %v273, %v1008
      %v1020 = vmul.f32 %v274, %v1012
      %v1021 = vmul.f32 %v275, %v1010
      %s1022 = scalar_lea.vmem %s1, 96
      %v1023 = vld [vmem:[%s1022] sm:$0xff]
      %v1024 = vld [vmem:[%s1022 + $0x8] sm:$0xff]
      %1031 = vrot.lane.b32.xlu0 %v1016, 96
      %v1032 = vpop.permute.xlu0 %1031
      %1033 = vrot.lane.b32.xlu0 %v1017, 96
      %v1034 = vpop.permute.xlu0 %1033
      %1035 = vrot.lane.b32.xlu0 %v1018, 96
      %v1036 = vpop.permute.xlu0 %1035
      %1037 = vrot.lane.b32.xlu0 %v1019, 96
      %v1038 = vpop.permute.xlu0 %1037
      %1039 = vrot.lane.b32.xlu0 %v1020, 96
      %v1040 = vpop.permute.xlu0 %1039
      %1041 = vrot.lane.b32.xlu0 %v1021, 96
      %v1042 = vpop.permute.xlu0 %1041
      %vm1043 = vcmask 785408
      %v1044 = vsel %vm1043, %v1032, %v1034
      %v1045 = vsel %vm1043, %v1034, %v1036
      %v1046 = vsel %vm1043, %v1038, %v1040
      %v1047 = vsel %vm1043, %v1040, %v1042
      %v1051 = vsel %vm310, %v1023, 0
      %v1054 = vsel %vm310, %v1024, 0
      %v1056 = vsel %vm317, %v1046, 0
      %v1058 = vsel %vm317, %v1047, 0
      %1060 = vmatprep.subr.mxu0 0.0
      %1061 = vmatpush1.msra.mxu0 0.0
      %1062 = vmatprep.subr.mxu0 0.0
      %1063 = vmatpush1.msra.mxu0 0.0
      %1064 = vmatprep.subr.mxu0 0.0
      %1065 = vmatpush1.msra.mxu0 0.0
      %1066 = vmatprep.subr.mxu0 0.0
      %1067 = vmatpush1.msra.mxu0 0.0
      %1068 = vmatprep.subr.mxu0 0.0
      %1069 = vmatpush1.msra.mxu0 0.0
      %1070 = vmatprep.subr.mxu0 0.0
      %1071 = vmatpush1.msra.mxu0 0.0
      %1072 = vmatprep.subr.mxu0 0.0
      %1073 = vmatpush1.msra.mxu0 0.0
      %1074 = vmatprep.subr.mxu0 0.0
      %1075 = vmatpush1.msra.mxu0 0.0
      %1076 = vmatprep.subr.mxu0 0.0
      %1077 = vmatpush1.msra.mxu0 0.0
      %1078 = vmatprep.subr.mxu0 0.0
      %1079 = vmatpush1.msra.mxu0 0.0
      %1080 = vmatprep.subr.mxu0 0.0
      %1081 = vmatpush1.msra.mxu0 0.0
      %1082 = vmatprep.subr.mxu0 0.0
      %1083 = vmatpush1.msra.mxu0 0.0
      %1084 = vmatprep.subr.mxu0 0.0
      %1085 = vmatpush1.msra.mxu0 0.0
      %1086 = vmatprep.subr.mxu0 0.0
      %1087 = vmatpush1.msra.mxu0 0.0
      %1088 = vmatprep.subr.mxu0 %v1058
      %1089 = vmatpush1.msra.mxu0 %v1056
      %1090 = vmatprep.subr.mxu0 %v1045
      %1091 = vmatpush1.msra.mxu0 %v1044
      %1092 = vmatprep.subr.mxu0 0.0
      %1093 = vmatpush2.msra.mxu0 0.0
      %1094 = vmatprep.subr.mxu0 0.0
      %1095 = vmatpush2.msra.mxu0 0.0
      %1096 = vmatprep.subr.mxu0 0.0
      %1097 = vmatpush2.msra.mxu0 0.0
      %1098 = vmatprep.subr.mxu0 0.0
      %1099 = vmatpush2.msra.mxu0 0.0
      %1100 = vmatprep.subr.mxu0 0.0
      %1101 = vmatpush2.msra.mxu0 0.0
      %1102 = vmatprep.subr.mxu0 0.0
      %1103 = vmatpush2.msra.mxu0 0.0
      %1104 = vmatprep.subr.mxu0 0.0
      %1105 = vmatpush2.msra.mxu0 0.0
      %1106 = vmatprep.subr.mxu0 0.0
      %1107 = vmatpush2.msra.mxu0 0.0
      %1108 = vmatprep.subr.mxu0 0.0
      %1109 = vmatpush2.msra.mxu0 0.0
      %1110 = vmatprep.subr.mxu0 0.0
      %1111 = vmatpush2.msra.mxu0 0.0
      %1112 = vmatprep.subr.mxu0 0.0
      %1113 = vmatpush2.msra.mxu0 0.0
      %1114 = vmatprep.subr.mxu0 0.0
      %1115 = vmatpush2.msra.mxu0 0.0
      %1116 = vmatprep.subr.mxu0 0.0
      %1117 = vmatpush2.msra.mxu0 0.0
      %1118 = vmatprep.subr.mxu0 0.0
      %1119 = vmatpush2.msra.mxu0 0.0
      %1120 = vmatprep.subr.mxu0 0.0
      %1121 = vmatpush2.msra.mxu0 0.0
      %1122 = vmatprep.subr.mxu0 0.0
      %1123 = vmatpush2.msra.mxu0 0.0
      %1124 = vmatprep.mubr.f32.mxu0 0.0
      %1125 = vmatmul.mubr.f32.gmra.mxu0 %v1051
      %v1126 = vpop.f32.mrf.mxu0
      %v1127 = vadd.f32 0.0, %v1126
      %v1128 = vpop.f32.mrf.mxu0
      %v1129 = vadd.f32 0.0, %v1128
      %1130 = vmatprep.mubr.f32.mxu0 0.0
      %1131 = vmatmul.mubr.f32.gmra.mxu0 %v1054
      %v1132 = vpop.f32.mrf.mxu0
      %v1133 = vadd.f32 0.0, %v1132
      %v1134 = vpop.f32.mrf.mxu0
      %v1135 = vadd.f32 0.0, %v1134
      %1136 = vdwg.mxu0
      %v1137 = vadd.f32 %v1003, %v1127
      %v1138 = vadd.f32 %v1004, %v1129
      %v1139 = vadd.f32 %v1005, %v1133
      %v1140 = vadd.f32 %v1006, %v1135
      %s1141 = scalar_lea.vmem %s1, 112
      %v1142 = vld [vmem:[%s1141] sm:$0xff]
      %v1143 = vld [vmem:[%s1141 + $0x8] sm:$0xff]
      %1144 = vrot.lane.b32.xlu0 %v270, 95
      %v1145 = vpop.permute.xlu0 %1144
      %1146 = vrot.lane.b32.xlu0 %v271, 95
      %v1147 = vpop.permute.xlu0 %1146
      %1148 = vrot.lane.b32.xlu0 %v272, 95
      %v1149 = vpop.permute.xlu0 %1148
      %1150 = vrot.lane.b32.xlu0 %v273, 95
      %v1151 = vpop.permute.xlu0 %1150
      %1152 = vrot.lane.b32.xlu0 %v274, 95
      %v1153 = vpop.permute.xlu0 %1152
      %1154 = vrot.lane.b32.xlu0 %v275, 95
      %v1155 = vpop.permute.xlu0 %1154
      %vm1156 = vcmask 777216
      %v1157 = vsel %vm1156, %v1145, %v1147
      %v1158 = vsel %vm1156, %v1147, %v1149
      %v1159 = vsel %vm1156, %v1151, %v1153
      %v1160 = vsel %vm1156, %v1153, %v1155
      %v1164 = vsel %vm310, %v1142, 0
      %v1167 = vsel %vm310, %v1143, 0
      %v1169 = vsel %vm317, %v1159, 0
      %v1171 = vsel %vm317, %v1160, 0
      %1173 = vmatprep.subr.mxu0 0.0
      %1174 = vmatpush1.msra.mxu0 0.0
      %1175 = vmatprep.subr.mxu0 0.0
      %1176 = vmatpush1.msra.mxu0 0.0
      %1177 = vmatprep.subr.mxu0 0.0
      %1178 = vmatpush1.msra.mxu0 0.0
      %1179 = vmatprep.subr.mxu0 0.0
      %1180 = vmatpush1.msra.mxu0 0.0
      %1181 = vmatprep.subr.mxu0 0.0
      %1182 = vmatpush1.msra.mxu0 0.0
      %1183 = vmatprep.subr.mxu0 0.0
      %1184 = vmatpush1.msra.mxu0 0.0
      %1185 = vmatprep.subr.mxu0 0.0
      %1186 = vmatpush1.msra.mxu0 0.0
      %1187 = vmatprep.subr.mxu0 0.0
      %1188 = vmatpush1.msra.mxu0 0.0
      %1189 = vmatprep.subr.mxu0 0.0
      %1190 = vmatpush1.msra.mxu0 0.0
      %1191 = vmatprep.subr.mxu0 0.0
      %1192 = vmatpush1.msra.mxu0 0.0
      %1193 = vmatprep.subr.mxu0 0.0
      %1194 = vmatpush1.msra.mxu0 0.0
      %1195 = vmatprep.subr.mxu0 0.0
      %1196 = vmatpush1.msra.mxu0 0.0
      %1197 = vmatprep.subr.mxu0 0.0
      %1198 = vmatpush1.msra.mxu0 0.0
      %1199 = vmatprep.subr.mxu0 0.0
      %1200 = vmatpush1.msra.mxu0 0.0
      %1201 = vmatprep.subr.mxu0 %v1171
      %1202 = vmatpush1.msra.mxu0 %v1169
      %1203 = vmatprep.subr.mxu0 %v1158
      %1204 = vmatpush1.msra.mxu0 %v1157
      %1205 = vmatprep.subr.mxu0 0.0
      %1206 = vmatpush2.msra.mxu0 0.0
      %1207 = vmatprep.subr.mxu0 0.0
      %1208 = vmatpush2.msra.mxu0 0.0
      %1209 = vmatprep.subr.mxu0 0.0
      %1210 = vmatpush2.msra.mxu0 0.0
      %1211 = vmatprep.subr.mxu0 0.0
      %1212 = vmatpush2.msra.mxu0 0.0
      %1213 = vmatprep.subr.mxu0 0.0
      %1214 = vmatpush2.msra.mxu0 0.0
      %1215 = vmatprep.subr.mxu0 0.0
      %1216 = vmatpush2.msra.mxu0 0.0
      %1217 = vmatprep.subr.mxu0 0.0
      %1218 = vmatpush2.msra.mxu0 0.0
      %1219 = vmatprep.subr.mxu0 0.0
      %1220 = vmatpush2.msra.mxu0 0.0
      %1221 = vmatprep.subr.mxu0 0.0
      %1222 = vmatpush2.msra.mxu0 0.0
      %1223 = vmatprep.subr.mxu0 0.0
      %1224 = vmatpush2.msra.mxu0 0.0
      %1225 = vmatprep.subr.mxu0 0.0
      %1226 = vmatpush2.msra.mxu0 0.0
      %1227 = vmatprep.subr.mxu0 0.0
      %1228 = vmatpush2.msra.mxu0 0.0
      %1229 = vmatprep.subr.mxu0 0.0
      %1230 = vmatpush2.msra.mxu0 0.0
      %1231 = vmatprep.subr.mxu0 0.0
      %1232 = vmatpush2.msra.mxu0 0.0
      %1233 = vmatprep.subr.mxu0 0.0
      %1234 = vmatpush2.msra.mxu0 0.0
      %1235 = vmatprep.subr.mxu0 0.0
      %1236 = vmatpush2.msra.mxu0 0.0
      %1237 = vmatprep.mubr.f32.mxu0 0.0
      %1238 = vmatmul.mubr.f32.gmra.mxu0 %v1164
      %v1239 = vpop.f32.mrf.mxu0
      %v1240 = vadd.f32 0.0, %v1239
      %v1241 = vpop.f32.mrf.mxu0
      %v1242 = vadd.f32 0.0, %v1241
      %1243 = vmatprep.mubr.f32.mxu0 0.0
      %1244 = vmatmul.mubr.f32.gmra.mxu0 %v1167
      %v1245 = vpop.f32.mrf.mxu0
      %v1246 = vadd.f32 0.0, %v1245
      %v1247 = vpop.f32.mrf.mxu0
      %v1248 = vadd.f32 0.0, %v1247
      %1249 = vdwg.mxu0
      %v1250 = vadd.f32 %v1137, %v1240
      %v1251 = vadd.f32 %v1138, %v1242
      %v1252 = vadd.f32 %v1139, %v1246
      %v1253 = vadd.f32 %v1140, %v1248
      %1254 = vrot.lane.b32.xlu0 %v262, 34
      %v1255 = vpop.permute.xlu0 %1254
      %1256 = vrot.lane.b32.xlu0 %v263, 34
      %v1257 = vpop.permute.xlu0 %1256
      %vm1258 = vcmask 277504
      %v1259 = vsel %vm1258, %v1255, %v1257
      %v1263 = vmul.f32 %v270, %v1255
      %v1264 = vmul.f32 %v271, %v1259
      %v1265 = vmul.f32 %v272, %v1257
      %v1266 = vmul.f32 %v273, %v1255
      %v1267 = vmul.f32 %v274, %v1259
      %v1268 = vmul.f32 %v275, %v1257
      %s1269 = scalar_lea.vmem %s1, 128
      %v1270 = vld [vmem:[%s1269] sm:$0xff]
      %v1271 = vld [vmem:[%s1269 + $0x8] sm:$0xff]
      %1278 = vrot.lane.b32.xlu0 %v1263, 94
      %v1279 = vpop.permute.xlu0 %1278
      %1280 = vrot.lane.b32.xlu0 %v1264, 94
      %v1281 = vpop.permute.xlu0 %1280
      %1282 = vrot.lane.b32.xlu0 %v1265, 94
      %v1283 = vpop.permute.xlu0 %1282
      %1284 = vrot.lane.b32.xlu0 %v1266, 94
      %v1285 = vpop.permute.xlu0 %1284
      %1286 = vrot.lane.b32.xlu0 %v1267, 94
      %v1287 = vpop.permute.xlu0 %1286
      %1288 = vrot.lane.b32.xlu0 %v1268, 94
      %v1289 = vpop.permute.xlu0 %1288
      %vm1290 = vcmask 769024
      %v1291 = vsel %vm1290, %v1279, %v1281
      %v1292 = vsel %vm1290, %v1281, %v1283
      %v1293 = vsel %vm1290, %v1285, %v1287
      %v1294 = vsel %vm1290, %v1287, %v1289
      %v1298 = vsel %vm310, %v1270, 0
      %v1301 = vsel %vm310, %v1271, 0
      %v1303 = vsel %vm317, %v1293, 0
      %v1305 = vsel %vm317, %v1294, 0
      %1307 = vmatprep.subr.mxu0 0.0
      %1308 = vmatpush1.msra.mxu0 0.0
      %1309 = vmatprep.subr.mxu0 0.0
      %1310 = vmatpush1.msra.mxu0 0.0
      %1311 = vmatprep.subr.mxu0 0.0
      %1312 = vmatpush1.msra.mxu0 0.0
      %1313 = vmatprep.subr.mxu0 0.0
      %1314 = vmatpush1.msra.mxu0 0.0
      %1315 = vmatprep.subr.mxu0 0.0
      %1316 = vmatpush1.msra.mxu0 0.0
      %1317 = vmatprep.subr.mxu0 0.0
      %1318 = vmatpush1.msra.mxu0 0.0
      %1319 = vmatprep.subr.mxu0 0.0
      %1320 = vmatpush1.msra.mxu0 0.0
      %1321 = vmatprep.subr.mxu0 0.0
      %1322 = vmatpush1.msra.mxu0 0.0
      %1323 = vmatprep.subr.mxu0 0.0
      %1324 = vmatpush1.msra.mxu0 0.0
      %1325 = vmatprep.subr.mxu0 0.0
      %1326 = vmatpush1.msra.mxu0 0.0
      %1327 = vmatprep.subr.mxu0 0.0
      %1328 = vmatpush1.msra.mxu0 0.0
      %1329 = vmatprep.subr.mxu0 0.0
      %1330 = vmatpush1.msra.mxu0 0.0
      %1331 = vmatprep.subr.mxu0 0.0
      %1332 = vmatpush1.msra.mxu0 0.0
      %1333 = vmatprep.subr.mxu0 0.0
      %1334 = vmatpush1.msra.mxu0 0.0
      %1335 = vmatprep.subr.mxu0 %v1305
      %1336 = vmatpush1.msra.mxu0 %v1303
      %1337 = vmatprep.subr.mxu0 %v1292
      %1338 = vmatpush1.msra.mxu0 %v1291
      %1339 = vmatprep.subr.mxu0 0.0
      %1340 = vmatpush2.msra.mxu0 0.0
      %1341 = vmatprep.subr.mxu0 0.0
      %1342 = vmatpush2.msra.mxu0 0.0
      %1343 = vmatprep.subr.mxu0 0.0
      %1344 = vmatpush2.msra.mxu0 0.0
      %1345 = vmatprep.subr.mxu0 0.0
      %1346 = vmatpush2.msra.mxu0 0.0
      %1347 = vmatprep.subr.mxu0 0.0
      %1348 = vmatpush2.msra.mxu0 0.0
      %1349 = vmatprep.subr.mxu0 0.0
      %1350 = vmatpush2.msra.mxu0 0.0
      %1351 = vmatprep.subr.mxu0 0.0
      %1352 = vmatpush2.msra.mxu0 0.0
      %1353 = vmatprep.subr.mxu0 0.0
      %1354 = vmatpush2.msra.mxu0 0.0
      %1355 = vmatprep.subr.mxu0 0.0
      %1356 = vmatpush2.msra.mxu0 0.0
      %1357 = vmatprep.subr.mxu0 0.0
      %1358 = vmatpush2.msra.mxu0 0.0
      %1359 = vmatprep.subr.mxu0 0.0
      %1360 = vmatpush2.msra.mxu0 0.0
      %1361 = vmatprep.subr.mxu0 0.0
      %1362 = vmatpush2.msra.mxu0 0.0
      %1363 = vmatprep.subr.mxu0 0.0
      %1364 = vmatpush2.msra.mxu0 0.0
      %1365 = vmatprep.subr.mxu0 0.0
      %1366 = vmatpush2.msra.mxu0 0.0
      %1367 = vmatprep.subr.mxu0 0.0
      %1368 = vmatpush2.msra.mxu0 0.0
      %1369 = vmatprep.subr.mxu0 0.0
      %1370 = vmatpush2.msra.mxu0 0.0
      %1371 = vmatprep.mubr.f32.mxu0 0.0
      %1372 = vmatmul.mubr.f32.gmra.mxu0 %v1298
      %v1373 = vpop.f32.mrf.mxu0
      %v1374 = vadd.f32 0.0, %v1373
      %v1375 = vpop.f32.mrf.mxu0
      %v1376 = vadd.f32 0.0, %v1375
      %1377 = vmatprep.mubr.f32.mxu0 0.0
      %1378 = vmatmul.mubr.f32.gmra.mxu0 %v1301
      %v1379 = vpop.f32.mrf.mxu0
      %v1380 = vadd.f32 0.0, %v1379
      %v1381 = vpop.f32.mrf.mxu0
      %v1382 = vadd.f32 0.0, %v1381
      %1383 = vdwg.mxu0
      %v1384 = vadd.f32 %v1250, %v1374
      %v1385 = vadd.f32 %v1251, %v1376
      %v1386 = vadd.f32 %v1252, %v1380
      %v1387 = vadd.f32 %v1253, %v1382
      %1389 = vset.pattern.permute.xlu0 0
      %1390 = vperm.xlu0 %1389, %v264
      %v1391 = vpop.permute.xlu0 %1390
      %1394 = vset.pattern.permute.xlu0 0
      %1395 = vperm.xlu0 %1394, %v265
      %v1396 = vpop.permute.xlu0 %1395
      %v1398 = vadd.f32 %v1384, %v1391
      %v1399 = vadd.f32 %v1385, %v1391
      %v1400 = vadd.f32 %v1386, %v1396
      %v1401 = vadd.f32 %v1387, %v1396
      %v1402 = vmax.f32 %v1398, 0.0
      %v1403 = vmax.f32 %v1399, 0.0
      %v1404 = vmax.f32 %v1400, 0.0
      %v1405 = vmax.f32 %v1401, 0.0
      %1407 = vset.pattern.permute.xlu0 0
      %1408 = vperm.xlu0 %1407, %v268
      %v1409 = vpop.permute.xlu0 %1408
      %1412 = vset.pattern.permute.xlu0 0
      %1413 = vperm.xlu0 %1412, %v269
      %v1414 = vpop.permute.xlu0 %1413
      %v1417 = vsel %vm630, %v266, 0
      %v1420 = vsel %vm630, %v267, 0
      %1422 = vmatprep.subr.mxu0 0.0
      %1423 = vmatpush1.msra.mxu0 0.0
      %1424 = vmatprep.subr.mxu0 0.0
      %1425 = vmatpush1.msra.mxu0 0.0
      %1426 = vmatprep.subr.mxu0 0.0
      %1427 = vmatpush1.msra.mxu0 0.0
      %1428 = vmatprep.subr.mxu0 0.0
      %1429 = vmatpush1.msra.mxu0 0.0
      %1430 = vmatprep.subr.mxu0 0.0
      %1431 = vmatpush1.msra.mxu0 0.0
      %1432 = vmatprep.subr.mxu0 0.0
      %1433 = vmatpush1.msra.mxu0 0.0
      %1434 = vmatprep.subr.mxu0 0.0
      %1435 = vmatpush1.msra.mxu0 0.0
      %1436 = vmatprep.subr.mxu0 0.0
      %1437 = vmatpush1.msra.mxu0 0.0
      %1438 = vmatprep.subr.mxu0 0.0
      %1439 = vmatpush1.msra.mxu0 0.0
      %1440 = vmatprep.subr.mxu0 0.0
      %1441 = vmatpush1.msra.mxu0 0.0
      %1442 = vmatprep.subr.mxu0 0.0
      %1443 = vmatpush1.msra.mxu0 0.0
      %1444 = vmatprep.subr.mxu0 0.0
      %1445 = vmatpush1.msra.mxu0 0.0
      %1446 = vmatprep.subr.mxu0 0.0
      %1447 = vmatpush1.msra.mxu0 0.0
      %1448 = vmatprep.subr.mxu0 0.0
      %1449 = vmatpush1.msra.mxu0 0.0
      %1450 = vmatprep.subr.mxu0 %v1405
      %1451 = vmatpush1.msra.mxu0 %v1404
      %1452 = vmatprep.subr.mxu0 %v1403
      %1453 = vmatpush1.msra.mxu0 %v1402
      %1454 = vmatprep.subr.mxu0 0.0
      %1455 = vmatpush2.msra.mxu0 0.0
      %1456 = vmatprep.subr.mxu0 0.0
      %1457 = vmatpush2.msra.mxu0 0.0
      %1458 = vmatprep.subr.mxu0 0.0
      %1459 = vmatpush2.msra.mxu0 0.0
      %1460 = vmatprep.subr.mxu0 0.0
      %1461 = vmatpush2.msra.mxu0 0.0
      %1462 = vmatprep.subr.mxu0 0.0
      %1463 = vmatpush2.msra.mxu0 0.0
      %1464 = vmatprep.subr.mxu0 0.0
      %1465 = vmatpush2.msra.mxu0 0.0
      %1466 = vmatprep.subr.mxu0 0.0
      %1467 = vmatpush2.msra.mxu0 0.0
      %1468 = vmatprep.subr.mxu0 0.0
      %1469 = vmatpush2.msra.mxu0 0.0
      %1470 = vmatprep.subr.mxu0 0.0
      %1471 = vmatpush2.msra.mxu0 0.0
      %1472 = vmatprep.subr.mxu0 0.0
      %1473 = vmatpush2.msra.mxu0 0.0
      %1474 = vmatprep.subr.mxu0 0.0
      %1475 = vmatpush2.msra.mxu0 0.0
      %1476 = vmatprep.subr.mxu0 0.0
      %1477 = vmatpush2.msra.mxu0 0.0
      %1478 = vmatprep.subr.mxu0 0.0
      %1479 = vmatpush2.msra.mxu0 0.0
      %1480 = vmatprep.subr.mxu0 0.0
      %1481 = vmatpush2.msra.mxu0 0.0
      %1482 = vmatprep.subr.mxu0 0.0
      %1483 = vmatpush2.msra.mxu0 0.0
      %1484 = vmatprep.subr.mxu0 0.0
      %1485 = vmatpush2.msra.mxu0 0.0
      %1486 = vmatprep.mubr.f32.mxu0 0.0
      %1487 = vmatmul.mubr.f32.gmra.mxu0 %v1417
      %v1488 = vpop.f32.mrf.mxu0
      %v1489 = vadd.f32 %v1409, %v1488
      %v1490 = vpop.f32.mrf.mxu0
      %v1491 = vadd.f32 %v1409, %v1490
      %1492 = vmatprep.mubr.f32.mxu0 0.0
      %1493 = vmatmul.mubr.f32.gmra.mxu0 %v1420
      %v1494 = vpop.f32.mrf.mxu0
      %v1495 = vadd.f32 %v1414, %v1494
      %v1496 = vpop.f32.mrf.mxu0
      %v1497 = vadd.f32 %v1414, %v1496
      %1498 = vdwg.mxu0
      %1503 = vrot.lane.b32.xlu0 %v1489, 17
      %v1504 = vpop.permute.xlu0 %1503
      %1505 = vrot.lane.b32.xlu0 %v1491, 17
      %v1506 = vpop.permute.xlu0 %1505
      %1507 = vrot.lane.b32.xlu0 %v1495, 17
      %v1508 = vpop.permute.xlu0 %1507
      %1509 = vrot.lane.b32.xlu0 %v1497, 17
      %v1510 = vpop.permute.xlu0 %1509
      %vm1511 = vcmask 138240
      %v1512 = vsel %vm1511, %v1504, %v1506
      %v1513 = vsel %vm1511, %v1508, %v1510
      %v1520 = vadd.f32 %v270, %v1504
      %v1521 = vadd.f32 %v271, %v1512
      %v1522 = vadd.f32 %v272, %v1506
      %v1523 = vadd.f32 %v273, %v1508
      %v1524 = vadd.f32 %v274, %v1513
      %v1525 = vadd.f32 %v275, %v1510
      %1532 = vrot.lane.b32.xlu0 %v1520, 111
      %v1533 = vpop.permute.xlu0 %1532
      %1534 = vrot.lane.b32.xlu0 %v1521, 111
      %v1535 = vpop.permute.xlu0 %1534
      %1536 = vrot.lane.b32.xlu0 %v1522, 111
      %v1537 = vpop.permute.xlu0 %1536
      %1538 = vrot.lane.b32.xlu0 %v1523, 111
      %v1539 = vpop.permute.xlu0 %1538
      %1540 = vrot.lane.b32.xlu0 %v1524, 111
      %v1541 = vpop.permute.xlu0 %1540
      %1542 = vrot.lane.b32.xlu0 %v1525, 111
      %v1543 = vpop.permute.xlu0 %1542
      %v1544 = vsel %vm775, %v1533, %v1535
      %v1545 = vsel %vm775, %v1535, %v1537
      %v1546 = vsel %vm775, %v1539, %v1541
      %v1547 = vsel %vm775, %v1541, %v1543
      %1552 = vst [vmem:[%s224] sm:$0xff] %v1544
      %1553 = vst [vmem:[%s224 + $0x8] sm:$0xff] %v1545
      %1554 = vst [vmem:[%s224 + $0x10] sm:$0x3] %v1546
      %1555 = vst [vmem:[%s224 + $0x18] sm:$0x3] %v1547
      %p1556 = scmp.lt.s32.totalorder %s16, 1
      %s1557 = scalar_select %p1556, %s16, 1
      %s1558 = smul.addr %s1557, 4
      %s1559 = smul.addr %s1558, 8
      %s1560 = scalar_lea.vmem %s5, %s1559
      // Predicated region
      $region41: #{tpu_custom_call.1} parent=39 // pred_check
        %p1561 = pneg %p144
      $region42: #{tpu_custom_call.1} parent=39 // pred_check_branch
        %1563 = sbr.rel (%p1561) target = $region44
      $region43: #{tpu_custom_call.1} parent=39 // pred_region
        _
      $region44: #{tpu_custom_call.1} parent=39 // pred_fallthru
        _
    $region40: #{tpu_custom_call.1} parent=5 // pred_fallthru
      _
    %p1564 = scmp.le.s32.totalorder 2, %s11
    // Predicated region
    $region45: #{tpu_custom_call.1} parent=5 // pred_check
      %p1565 = pneg %p1564
    $region46: #{tpu_custom_call.1} parent=5 // pred_check_branch
      %1567 = sbr.rel (%p1565) target = $region48
    $region47: #{tpu_custom_call.1} parent=5 // pred_region
      %s1568 = ssub.s32 %s11, 2
      // Predicated region
      $region49: #{tpu_custom_call.1} parent=47 // pred_check
        %p1569 = pneg %p150
      $region50: #{tpu_custom_call.1} parent=47 // pred_check_branch
        %1571 = sbr.rel (%p1569) target = $region52
      $region51: #{tpu_custom_call.1} parent=47 // pred_region
        %p1572 = scmp.lt.s32.totalorder %s17, 1
        %s1573 = scalar_select %p1572, %s17, 1
        %s1574 = smul.addr %s1573, 4
        %s1575 = smul.addr %s1574, 8
        %s1576 = scalar_lea.vmem %s5, %s1575
      $region52: #{tpu_custom_call.1} parent=47 // pred_fallthru
        _
    $region48: #{tpu_custom_call.1} parent=5 // pred_fallthru
      _
  $region6: #{tpu_custom_call.1} parent=0 // loop_footer
    %s15 = sadd.s32 1, %s11
  $region7: #{tpu_custom_call.1} parent=0 // loop_footer_branch
    %10 = sbr.rel target = $region3
  $region8: #{tpu_custom_call.1} parent=0 // loop_exit
    _

</llo_original>
